<compile_context>
chip_gen: v5e
topology: v5e:2x2
jax: 0.10.0
libtpu: 0.0.40
codegen_flags: <defaults>
</compile_context>

<pallas_src>
import functools
import math

import jax
import jax.numpy as jnp
from jax.experimental import pallas as pl
from jax.experimental.pallas import tpu as pltpu

LN_EPS = 1e-5  # PyTorch nn.LayerNorm default


# ----------------------------------------------------------------------------
# hardware-aware sizing helpers
# ----------------------------------------------------------------------------
def _vmem_capacity_bytes():
    try:
        return int(pltpu.get_tpu_info().vmem_capacity_bytes)
    except Exception:
        return 64 * 1024 * 1024          # conservative default (v7x VMEM)


def _pick_batch_tile(B, Nl, Nc, D, dff, capacity):
    """Batches per grid step: enough rows to feed the MXU, bounded by a
    generation-aware VMEM budget, with (bt*Nl, bt*Nc) sublane-divisible and
    >=2 grid steps whenever B >= 2 (v7x megacore)."""
    def sub(n):                       # smallest f such that (f*n) % 8 == 0
        return 8 // math.gcd(n, 8)
    need = sub(Nl) * sub(Nc) // math.gcd(sub(Nl), sub(Nc))

    bt = max(1, 512 // max(Nl, Nc))   # target ~512 rows/step on the long side
    per_batch = 4 * (Nl * (8 * D + 4 * dff + Nc) + 4 * Nc * D)
    budget = int(0.30 * capacity)
    bt = min(bt, max(1, budget // max(per_batch, 1)))
    if B >= 2:
        bt = min(bt, B // 2)          # >=2 grid steps -> both v7x cores busy
    bt = max(need, (max(bt, 1) // need) * need)
    if bt >= B:
        bt = B                        # full-array blocks are always layout-legal
    return bt


def _estimate_vmem_bytes(bt, Nl, Nc, D, inner, dff):
    weights = 2 * (8 * D * inner + 6 * D * dff)            # bf16 weight bytes
    consts = 4 * (14 * D + 4 * dff)
    blocks = 4 * bt * (2 * Nl * D + Nc * D)                # x / out / ctx blocks
    interm = 4 * bt * (Nl * (6 * D + 3 * dff + Nc + inner)
                       + Nc * (3 * D + 2 * inner))
    return 2 * (weights + consts + blocks) + interm        # x2: double buffering


def _vmem_limit_bytes(est, capacity):
    cap = int(0.75 * capacity)        # ~48 MiB on v7x, ~96 MiB on v5e/v6e
    return int(min(cap, max(32 * 1024 * 1024, 2 * est)))


# ----------------------------------------------------------------------------
# in-kernel building blocks
# ----------------------------------------------------------------------------
def _ln(x, gamma, beta):
    """LayerNorm over the lane axis, f32 math, two-pass (centered) variance."""
    xf = x.astype(jnp.float32)
    mean = jnp.mean(xf, axis=-1, keepdims=True)
    cen = xf - mean
    var = jnp.mean(cen * cen, axis=-1, keepdims=True)
    return cen * jax.lax.rsqrt(var + LN_EPS) * gamma + beta


def _attn_core(xn, cn, wq_ref, wkv_ref, wo_ref, bo_row, att_ref,
               *, bt, nq, nk, heads, dim_head):
    """Scaled-dot-product attention on row-flattened operands.

    xn: (bt*nq, D) f32 normed queries; cn: (bt*nk, D) f32 normed context.
    Returns (bt*nq, D) f32 (output projection + bias, pre-residual)."""
    inner = heads * dim_head
    scale = float(dim_head) ** -0.5

    # big row-batched projections (bf16 operands, f32 accumulation)
    q = jnp.dot(xn.astype(jnp.bfloat16), wq_ref[...],
                preferred_element_type=jnp.float32) * scale        # (bt*nq, inner)
    kv = jnp.dot(cn.astype(jnp.bfloat16), wkv_ref[...],
                 preferred_element_type=jnp.float32)               # (bt*nk, 2*inner)

    q3 = q.reshape(bt, nq, inner)
    k3 = kv[:, :inner].reshape(bt, nk, inner)
    v3 = kv[:, inner:].reshape(bt, nk, inner)

    for h in range(heads):
        sl = slice(h * dim_head, (h + 1) * dim_head)
        sim = jnp.einsum("bqd,bkd->bqk",
                         q3[:, :, sl].astype(jnp.bfloat16),
                         k3[:, :, sl].astype(jnp.bfloat16),
                         preferred_element_type=jnp.float32)       # (bt, nq, nk)
        sim = sim - jnp.max(sim, axis=-1, keepdims=True)
        p = jnp.exp(sim)
        p = p * pl.reciprocal(jnp.sum(p, axis=-1, keepdims=True), approx=True)
        oh = jnp.einsum("bqk,bkd->bqd",
                        p.astype(jnp.bfloat16),
                        v3[:, :, sl].astype(jnp.bfloat16),
                        preferred_element_type=jnp.float32)        # (bt, nq, dh)
        att_ref[:, sl] = oh.reshape(bt * nq, dim_head)

    # single full-width output projection (with bias)
    return jnp.dot(att_ref[...].astype(jnp.bfloat16), wo_ref[...],
                   preferred_element_type=jnp.float32) + bo_row


def _ff_core(x, gamma, beta, w1_ref, b1_row, w2_ref, b2_row, *, dff):
    """LayerNorm -> Linear(D, 2*dff) -> GEGLU -> Linear(dff, D) (pre-residual)."""
    xn = _ln(x, gamma, beta)
    h = jnp.dot(xn.astype(jnp.bfloat16), w1_ref[...],
                preferred_element_type=jnp.float32) + b1_row
    a, g = h[:, :dff], h[:, dff:]
    # TODO(synk): PyTorch F.gelu defaults to the exact erf GELU; the tanh
    # approximation is used here (and in the reference) for portable lowering.
    hg = a * jax.nn.gelu(g, approximate=True)
    return jnp.dot(hg.astype(jnp.bfloat16), w2_ref[...],
                   preferred_element_type=jnp.float32) + b2_row


# ----------------------------------------------------------------------------
# fused whole-layer kernel
# ----------------------------------------------------------------------------
def layer_kernel(x_ref, ctx_ref, consts_ref, b1s_ref,
                 ca_wq, ca_wkv, ca_wo, ff1_w1, ff1_w2,
                 sa_wq, sa_wkv, sa_wo, ff2_w1, ff2_w2,
                 o_ref, att_ref,
                 *, bt, nl, nc, heads, dim_head, dff):
    c = consts_ref[...].astype(jnp.float32)      # (14, D) packed LN params + biases
    b1s = b1s_ref[...].astype(jnp.float32)       # (2, 2*dff)

    x = x_ref[...].astype(jnp.float32)           # (bt*nl, D)

    # 1) PreNorm cross-attention + residual
    xn = _ln(x, c[0:1], c[1:2])
    cn = _ln(ctx_ref[...], c[2:3], c[3:4])
    x = x + _attn_core(xn, cn, ca_wq, ca_wkv, ca_wo, c[4:5], att_ref,
                       bt=bt, nq=nl, nk=nc, heads=heads, dim_head=dim_head)

    # 2) PreNorm feed-forward (GEGLU) + residual
    x = x + _ff_core(x, c[5:6], c[6:7], ff1_w1, b1s[0:1], ff1_w2, c[7:8], dff=dff)

    # 3) PreNorm self-attention + residual (context == the normed x; single LN)
    xn = _ln(x, c[8:9], c[9:10])
    x = x + _attn_core(xn, xn, sa_wq, sa_wkv, sa_wo, c[10:11], att_ref,
                       bt=bt, nq=nl, nk=nl, heads=heads, dim_head=dim_head)

    # 4) PreNorm feed-forward (GEGLU) + residual
    x = x + _ff_core(x, c[11:12], c[12:13], ff2_w1, b1s[1:2], ff2_w2, c[13:14],
                     dff=dff)

    o_ref[...] = x.astype(o_ref.dtype)


# ----------------------------------------------------------------------------
# wrapper
# ----------------------------------------------------------------------------
def lbanp_encoder_layer(params, context_encodings, latents, *, heads):
    """Fused LBANPEncoderLayer.forward.  latents: [B, Nl, D], context: [B, Nc, D]."""
    B, Nl, D = latents.shape
    Bc, Nc, Dc = context_encodings.shape
    assert B == Bc and D == Dc
    pca, pf1 = params["cross_attn"], params["cross_ff"]
    psa, pf2 = params["latent_self_attn"], params["latent_ff"]
    inner = pca["wq"].shape[1]
    assert inner % heads == 0
    dim_head = inner // heads
    dff = pf1["w2"].shape[0]

    capacity = _vmem_capacity_bytes()
    bt = _pick_batch_tile(B, Nl, Nc, D, dff, capacity)
    grid = (pl.cdiv(B, bt),)

    # row-flattened activations (free HBM reshape; no padding / slicing needed)
    x2 = latents.reshape(B * Nl, D)
    c2 = context_encodings.reshape(B * Nc, D)

    # small per-layer constants packed into two lane-dense inputs (f32)
    consts = jnp.stack([
        pca["ln_gamma"], pca["ln_beta"], pca["ctx_ln_gamma"], pca["ctx_ln_beta"],
        pca["bo"],
        pf1["ln_gamma"], pf1["ln_beta"], pf1["b2"],
        psa["ln_gamma"], psa["ln_beta"], psa["bo"],
        pf2["ln_gamma"], pf2["ln_beta"], pf2["b2"],
    ]).astype(jnp.float32)                                            # (14, D)
    b1s = jnp.stack([pf1["b1"], pf2["b1"]]).astype(jnp.float32)       # (2, 2*dff)

    # MXU operands in bf16, cast once here (f32 accumulation in-kernel)
    weights = [w.astype(jnp.bfloat16) for w in (
        pca["wq"], pca["wkv"], pca["wo"], pf1["w1"], pf1["w2"],
        psa["wq"], psa["wkv"], psa["wo"], pf2["w1"], pf2["w2"])]

    est = _estimate_vmem_bytes(bt, Nl, Nc, D, inner, dff)

    def const_spec(shape):
        return pl.BlockSpec(shape, lambda i: (0,) * len(shape))

    kernel = functools.partial(layer_kernel, bt=bt, nl=Nl, nc=Nc,
                               heads=heads, dim_head=dim_head, dff=dff)

    out2 = pl.pallas_call(
        kernel,
        out_shape=jax.ShapeDtypeStruct((B * Nl, D), latents.dtype),
        grid_spec=pltpu.PrefetchScalarGridSpec(
            num_scalar_prefetch=0,
            grid=grid,
            in_specs=[
                pl.BlockSpec((bt * Nl, D), lambda i: (i, 0)),   # latent rows
                pl.BlockSpec((bt * Nc, D), lambda i: (i, 0)),   # context rows
                const_spec((14, D)),                            # packed LN/bias consts
                const_spec((2, 2 * dff)),                       # ff b1 vectors
                const_spec((D, inner)),                         # cross Wq
                const_spec((D, 2 * inner)),                     # cross Wkv
                const_spec((inner, D)),                         # cross Wo
                const_spec((D, 2 * dff)),                       # ff1   W1
                const_spec((dff, D)),                           # ff1   W2
                const_spec((D, inner)),                         # self  Wq
                const_spec((D, 2 * inner)),                     # self  Wkv
                const_spec((inner, D)),                         # self  Wo
                const_spec((D, 2 * dff)),                       # ff2   W1
                const_spec((dff, D)),                           # ff2   W2
            ],
            out_specs=pl.BlockSpec((bt * Nl, D), lambda i: (i, 0)),
            scratch_shapes=[pltpu.VMEM((bt * Nl, inner), jnp.float32)],
        ),
        compiler_params=pltpu.CompilerParams(
            dimension_semantics=("parallel",),
            vmem_limit_bytes=_vmem_limit_bytes(est, capacity),
        ),
    )(x2, c2, consts, b1s, *weights)

    return out2.reshape(B, Nl, D)


# ----------------------------------------------------------------------------
# pure-JAX reference (mirrors the PyTorch module, f32 throughout)
# ----------------------------------------------------------------------------
def _ln_ref(x, gamma, beta):
    mean = jnp.mean(x, axis=-1, keepdims=True)
    var = jnp.mean((x - mean) ** 2, axis=-1, keepdims=True)
    return (x - mean) / jnp.sqrt(var + LN_EPS) * gamma + beta


def _attention_ref(xn, cn, p, heads):
    B, Nq, _ = xn.shape
    inner = p["wq"].shape[1]
    dh = inner // heads
    q = jnp.einsum("bnd,de->bne", xn, p["wq"])
    kv = jnp.einsum("bnd,de->bne", cn, p["wkv"])
    k, v = kv[..., :inner], kv[..., inner:]

    def split(t):
        b, n, _ = t.shape
        return t.reshape(b, n, heads, dh).transpose(0, 2, 1, 3)

    qh, kh, vh = split(q), split(k), split(v)
    sim = jnp.einsum("bhid,bhjd->bhij", qh, kh) * (float(dh) ** -0.5)
    attn = jax.nn.softmax(sim, axis=-1)
    out = jnp.einsum("bhij,bhjd->bhid", attn, vh)
    out = out.transpose(0, 2, 1, 3).reshape(B, Nq, inner)
    return jnp.einsum("bnd,de->bne", out, p["wo"]) + p["bo"]


def _prenorm_ff_ref(x, p):
    xn = _ln_ref(x, p["ln_gamma"], p["ln_beta"])
    h = jnp.einsum("bnd,df->bnf", xn, p["w1"]) + p["b1"]
    dff = p["w2"].shape[0]
    a, g = h[..., :dff], h[..., dff:]
    y = jnp.einsum("bnf,fd->bnd", a * jax.nn.gelu(g, approximate=True),
                   p["w2"]) + p["b2"]
    return y + x


def lbanp_encoder_layer_ref(params, context_encodings, latents, heads):
    x = latents
    pa = params["cross_attn"]
    xn = _ln_ref(x, pa["ln_gamma"], pa["ln_beta"])
    cn = _ln_ref(context_encodings, pa["ctx_ln_gamma"], pa["ctx_ln_beta"])
    x = _attention_ref(xn, cn, pa, heads) + x
    x = _prenorm_ff_ref(x, params["cross_ff"])
    pa = params["latent_self_attn"]
    xn = _ln_ref(x, pa["ln_gamma"], pa["ln_beta"])
    x = _attention_ref(xn, xn, pa, heads) + x
    x = _prenorm_ff_ref(x, params["latent_ff"])
    return x


# ----------------------------------------------------------------------------
# deterministic parameter construction
# ----------------------------------------------------------------------------
def init_params(key, d_model, nhead, dim_feedforward):
    inner = d_model  # dim_head * nhead with dim_head = d_model // nhead
    keys = iter(jax.random.split(key, 40))

    def lin(fan_in, fan_out):
        return jax.random.normal(next(keys), (fan_in, fan_out),
                                 jnp.float32) / jnp.sqrt(fan_in)

    def vec(n, scale=0.02):
        return scale * jax.random.normal(next(keys), (n,), jnp.float32)

    def ln(n):
        k1, k2 = jax.random.split(next(keys))
        return (1.0 + 0.1 * jax.random.normal(k1, (n,), jnp.float32),
                0.02 * jax.random.normal(k2, (n,), jnp.float32))

    def attn_block(cross):
        g, b = ln(d_model)
        blk = dict(ln_gamma=g, ln_beta=b,
                   wq=lin(d_model, inner), wkv=lin(d_model, 2 * inner),
                   wo=lin(inner, d_model), bo=vec(d_model))
        if cross:
            gc, bc = ln(d_model)
            blk.update(ctx_ln_gamma=gc, ctx_ln_beta=bc)
        return blk

    def ff_block():
        g, b = ln(d_model)
        return dict(ln_gamma=g, ln_beta=b,
                    w1=lin(d_model, 2 * dim_feedforward),
                    b1=vec(2 * dim_feedforward),
                    w2=lin(dim_feedforward, d_model),
                    b2=vec(d_model))

    return dict(cross_attn=attn_block(True), cross_ff=ff_block(),
                latent_self_attn=attn_block(False), latent_ff=ff_block())


# ----------------------------------------------------------------------------
# main
# ----------------------------------------------------------------------------
def _run_case(name, *, B, n_ctx, n_latent, d_model, nhead, dff, key):
    kp, kc, kl = jax.random.split(key, 3)
    params = init_params(kp, d_model, nhead, dff)
    ctx = jax.random.normal(kc, (B, n_ctx, d_model), jnp.float32)
    lat = jax.random.normal(kl, (B, n_latent, d_model), jnp.float32)

    layer = jax.jit(functools.partial(lbanp_encoder_layer, heads=nhead))
    out = jax.block_until_ready(layer(params, ctx, lat))
    assert out.shape == lat.shape

    ref = lbanp_encoder_layer_ref(params, ctx, lat, nhead)
    rel = float(jnp.linalg.norm(out - ref) / jnp.linalg.norm(ref))
    maxd = float(jnp.max(jnp.abs(out - ref)))
    # tolerances sized for bf16 MXU operands vs. the pure-f32 reference
    assert rel < 4e-2 and maxd < 2e-1, \
        f"{name}: rel_err={rel:.4e} max|diff|={maxd:.4e}"


if __name__ == "__main__":
    key = jax.random.PRNGKey(0)
    k1, k2 = jax.random.split(key)

    # case 1: two single-batch grid steps (bt == 1 path; v7x gets 2 steps)
    _run_case("small", B=2, n_ctx=16, n_latent=8, d_model=128, nhead=4,
              dff=128, key=k1)
    # case 2: two batches per grid step (row-batched bt > 1 projection path)
    _run_case("batched", B=4, n_ctx=32, n_latent=16, d_model=128, nhead=4,
              dff=256, key=k2)

    print("KERNEL_OK")
</pallas_src>

<mosaic_0001>
module attributes {stable_mosaic.version = 11 : i64} {
  func.func @layer_kernel(%arg0: i32, %arg1: memref<8x128xf32, #tpu.memory_space<vmem>>, %arg2: memref<16x128xf32, #tpu.memory_space<vmem>>, %arg3: memref<14x128xf32, #tpu.memory_space<vmem>>, %arg4: memref<2x256xf32, #tpu.memory_space<vmem>>, %arg5: memref<128x128xbf16, #tpu.memory_space<vmem>>, %arg6: memref<128x256xbf16, #tpu.memory_space<vmem>>, %arg7: memref<128x128xbf16, #tpu.memory_space<vmem>>, %arg8: memref<128x256xbf16, #tpu.memory_space<vmem>>, %arg9: memref<128x128xbf16, #tpu.memory_space<vmem>>, %arg10: memref<128x128xbf16, #tpu.memory_space<vmem>>, %arg11: memref<128x256xbf16, #tpu.memory_space<vmem>>, %arg12: memref<128x128xbf16, #tpu.memory_space<vmem>>, %arg13: memref<128x256xbf16, #tpu.memory_space<vmem>>, %arg14: memref<128x128xbf16, #tpu.memory_space<vmem>>, %arg15: memref<8x128xf32, #tpu.memory_space<vmem>>, %arg16: memref<8x128xf32, #tpu.memory_space<vmem>>) attributes {dimension_semantics = [#tpu.dimension_semantics<parallel>], iteration_bounds = array<i64: 2>, scalar_prefetch = 0 : i64, scratch_operands = 1 : i64, tpu.core_type = #tpu.core_type<tc>, window_params = [{transform_indices = @transform_0, window_bounds = array<i64: 8, 128>}, {transform_indices = @transform_1, window_bounds = array<i64: 16, 128>}, {pipeline_mode = #tpu.pipeline_mode<synchronous>, transform_indices = @transform_2, window_bounds = array<i64: 14, 128>}, {pipeline_mode = #tpu.pipeline_mode<synchronous>, transform_indices = @transform_3, window_bounds = array<i64: 2, 256>}, {pipeline_mode = #tpu.pipeline_mode<synchronous>, transform_indices = @transform_4, window_bounds = array<i64: 128, 128>}, {pipeline_mode = #tpu.pipeline_mode<synchronous>, transform_indices = @transform_5, window_bounds = array<i64: 128, 256>}, {pipeline_mode = #tpu.pipeline_mode<synchronous>, transform_indices = @transform_6, window_bounds = array<i64: 128, 128>}, {pipeline_mode = #tpu.pipeline_mode<synchronous>, transform_indices = @transform_7, window_bounds = array<i64: 128, 256>}, {pipeline_mode = #tpu.pipeline_mode<synchronous>, transform_indices = @transform_8, window_bounds = array<i64: 128, 128>}, {pipeline_mode = #tpu.pipeline_mode<synchronous>, transform_indices = @transform_9, window_bounds = array<i64: 128, 128>}, {pipeline_mode = #tpu.pipeline_mode<synchronous>, transform_indices = @transform_10, window_bounds = array<i64: 128, 256>}, {pipeline_mode = #tpu.pipeline_mode<synchronous>, transform_indices = @transform_11, window_bounds = array<i64: 128, 128>}, {pipeline_mode = #tpu.pipeline_mode<synchronous>, transform_indices = @transform_12, window_bounds = array<i64: 128, 256>}, {pipeline_mode = #tpu.pipeline_mode<synchronous>, transform_indices = @transform_13, window_bounds = array<i64: 128, 128>}, {transform_indices = @transform_14, window_bounds = array<i64: 8, 128>}]} {
    %c0 = arith.constant 0 : index
    %c0_0 = arith.constant 0 : index
    %0 = vector.load %arg3[%c0, %c0_0] : memref<14x128xf32, #tpu.memory_space<vmem>>, vector<14x128xf32>
    %c0_1 = arith.constant 0 : index
    %c0_2 = arith.constant 0 : index
    %1 = vector.load %arg4[%c0_1, %c0_2] : memref<2x256xf32, #tpu.memory_space<vmem>>, vector<2x256xf32>
    %c0_3 = arith.constant 0 : index
    %c0_4 = arith.constant 0 : index
    %2 = vector.load %arg1[%c0_3, %c0_4] : memref<8x128xf32, #tpu.memory_space<vmem>>, vector<8x128xf32>
    %3 = vector.extract_strided_slice %0 {offsets = [0, 0], sizes = [1, 128], strides = [1, 1]} : vector<14x128xf32> to vector<1x128xf32>
    %4 = vector.extract_strided_slice %0 {offsets = [1, 0], sizes = [1, 128], strides = [1, 1]} : vector<14x128xf32> to vector<1x128xf32>
    %cst = arith.constant dense<0.000000e+00> : vector<8xf32>
    %5 = vector.multi_reduction <add>, %2, %cst [1] : vector<8x128xf32> to vector<8xf32>
    %6 = vector.shape_cast %5 : vector<8xf32> to vector<8x1xf32>
    %cst_5 = arith.constant 1.280000e+02 : f32
    %7 = vector.broadcast %cst_5 : f32 to vector<8x1xf32>
    %8 = arith.divf %6, %7 : vector<8x1xf32>
    %9 = vector.broadcast %8 : vector<8x1xf32> to vector<8x128xf32>
    %10 = arith.subf %2, %9 : vector<8x128xf32>
    %11 = arith.mulf %10, %10 : vector<8x128xf32>
    %cst_6 = arith.constant dense<0.000000e+00> : vector<8xf32>
    %12 = vector.multi_reduction <add>, %11, %cst_6 [1] : vector<8x128xf32> to vector<8xf32>
    %13 = vector.shape_cast %12 : vector<8xf32> to vector<8x1xf32>
    %cst_7 = arith.constant 1.280000e+02 : f32
    %14 = vector.broadcast %cst_7 : f32 to vector<8x1xf32>
    %15 = arith.divf %13, %14 : vector<8x1xf32>
    %cst_8 = arith.constant 9.99999974E-6 : f32
    %16 = vector.broadcast %cst_8 : f32 to vector<8x1xf32>
    %17 = arith.addf %15, %16 : vector<8x1xf32>
    %18 = math.rsqrt %17 : vector<8x1xf32>
    %19 = vector.broadcast %18 : vector<8x1xf32> to vector<8x128xf32>
    %20 = arith.mulf %10, %19 : vector<8x128xf32>
    %21 = vector.broadcast %3 : vector<1x128xf32> to vector<8x128xf32>
    %22 = arith.mulf %20, %21 : vector<8x128xf32>
    %23 = vector.broadcast %4 : vector<1x128xf32> to vector<8x128xf32>
    %24 = arith.addf %22, %23 : vector<8x128xf32>
    %c0_9 = arith.constant 0 : index
    %c0_10 = arith.constant 0 : index
    %25 = vector.load %arg2[%c0_9, %c0_10] : memref<16x128xf32, #tpu.memory_space<vmem>>, vector<16x128xf32>
    %26 = vector.extract_strided_slice %0 {offsets = [2, 0], sizes = [1, 128], strides = [1, 1]} : vector<14x128xf32> to vector<1x128xf32>
    %27 = vector.extract_strided_slice %0 {offsets = [3, 0], sizes = [1, 128], strides = [1, 1]} : vector<14x128xf32> to vector<1x128xf32>
    %cst_11 = arith.constant dense<0.000000e+00> : vector<16xf32>
    %28 = vector.multi_reduction <add>, %25, %cst_11 [1] : vector<16x128xf32> to vector<16xf32>
    %29 = vector.shape_cast %28 : vector<16xf32> to vector<16x1xf32>
    %cst_12 = arith.constant 1.280000e+02 : f32
    %30 = vector.broadcast %cst_12 : f32 to vector<16x1xf32>
    %31 = arith.divf %29, %30 : vector<16x1xf32>
    %32 = vector.broadcast %31 : vector<16x1xf32> to vector<16x128xf32>
    %33 = arith.subf %25, %32 : vector<16x128xf32>
    %34 = arith.mulf %33, %33 : vector<16x128xf32>
    %cst_13 = arith.constant dense<0.000000e+00> : vector<16xf32>
    %35 = vector.multi_reduction <add>, %34, %cst_13 [1] : vector<16x128xf32> to vector<16xf32>
    %36 = vector.shape_cast %35 : vector<16xf32> to vector<16x1xf32>
    %cst_14 = arith.constant 1.280000e+02 : f32
    %37 = vector.broadcast %cst_14 : f32 to vector<16x1xf32>
    %38 = arith.divf %36, %37 : vector<16x1xf32>
    %cst_15 = arith.constant 9.99999974E-6 : f32
    %39 = vector.broadcast %cst_15 : f32 to vector<16x1xf32>
    %40 = arith.addf %38, %39 : vector<16x1xf32>
    %41 = math.rsqrt %40 : vector<16x1xf32>
    %42 = vector.broadcast %41 : vector<16x1xf32> to vector<16x128xf32>
    %43 = arith.mulf %33, %42 : vector<16x128xf32>
    %44 = vector.broadcast %26 : vector<1x128xf32> to vector<16x128xf32>
    %45 = arith.mulf %43, %44 : vector<16x128xf32>
    %46 = vector.broadcast %27 : vector<1x128xf32> to vector<16x128xf32>
    %47 = arith.addf %45, %46 : vector<16x128xf32>
    %48 = vector.extract_strided_slice %0 {offsets = [4, 0], sizes = [1, 128], strides = [1, 1]} : vector<14x128xf32> to vector<1x128xf32>
    %49 = arith.truncf %24 : vector<8x128xf32> to vector<8x128xbf16>
    %c0_16 = arith.constant 0 : index
    %c0_17 = arith.constant 0 : index
    %50 = vector.load %arg5[%c0_16, %c0_17] : memref<128x128xbf16, #tpu.memory_space<vmem>>, vector<128x128xbf16>
    %cst_18 = arith.constant dense<0.000000e+00> : vector<8x128xf32>
    %51 = tpu.matmul %49, %50, %cst_18 {dimension_numbers = #tpu.dot_dimension_numbers<[1], [0], [0], [1], [0, 0, 1, 1], [], []>} : vector<8x128xbf16>, vector<128x128xbf16>, vector<8x128xf32> -> vector<8x128xf32>
    %cst_19 = arith.constant 0.176776692 : f32
    %52 = vector.broadcast %cst_19 : f32 to vector<8x128xf32>
    %53 = arith.mulf %51, %52 : vector<8x128xf32>
    %54 = arith.truncf %47 : vector<16x128xf32> to vector<16x128xbf16>
    %c0_20 = arith.constant 0 : index
    %c0_21 = arith.constant 0 : index
    %55 = vector.load %arg6[%c0_20, %c0_21] : memref<128x256xbf16, #tpu.memory_space<vmem>>, vector<128x256xbf16>
    %cst_22 = arith.constant dense<0.000000e+00> : vector<16x256xf32>
    %56 = tpu.matmul %54, %55, %cst_22 {dimension_numbers = #tpu.dot_dimension_numbers<[1], [0], [0], [1], [0, 0, 1, 1], [], []>} : vector<16x128xbf16>, vector<128x256xbf16>, vector<16x256xf32> -> vector<16x256xf32>
    %57 = vector.shape_cast %53 : vector<8x128xf32> to vector<1x8x128xf32>
    %58 = vector.extract_strided_slice %56 {offsets = [0, 0], sizes = [16, 128], strides = [1, 1]} : vector<16x256xf32> to vector<16x128xf32>
    %59 = vector.shape_cast %58 : vector<16x128xf32> to vector<1x16x128xf32>
    %60 = vector.extract_strided_slice %56 {offsets = [0, 128], sizes = [16, 128], strides = [1, 1]} : vector<16x256xf32> to vector<16x128xf32>
    %61 = vector.shape_cast %60 : vector<16x128xf32> to vector<1x16x128xf32>
    %62 = vector.extract_strided_slice %57 {offsets = [0, 0, 0], sizes = [1, 8, 32], strides = [1, 1, 1]} : vector<1x8x128xf32> to vector<1x8x32xf32>
    %63 = arith.truncf %62 : vector<1x8x32xf32> to vector<1x8x32xbf16>
    %64 = vector.extract_strided_slice %59 {offsets = [0, 0, 0], sizes = [1, 16, 32], strides = [1, 1, 1]} : vector<1x16x128xf32> to vector<1x16x32xf32>
    %65 = arith.truncf %64 : vector<1x16x32xf32> to vector<1x16x32xbf16>
    "tpu.trace_start"() <{level = 10 : i32, message = "bqd,bkd->bqk"}> : () -> ()
    %cst_23 = arith.constant dense<0.000000e+00> : vector<1x8x16xf32>
    %66 = tpu.matmul %63, %65, %cst_23 {dimension_numbers = #tpu.dot_dimension_numbers<[2], [2], [1], [1], [0, 0, 0, 1, 1, 1], [0], [0]>} : vector<1x8x32xbf16>, vector<1x16x32xbf16>, vector<1x8x16xf32> -> vector<1x8x16xf32>
    "tpu.trace_stop"() : () -> ()
    %cst_24 = arith.constant dense<0xFF800000> : vector<1x8xf32>
    %67 = vector.multi_reduction <maximumf>, %66, %cst_24 [2] : vector<1x8x16xf32> to vector<1x8xf32>
    %68 = vector.shape_cast %67 : vector<1x8xf32> to vector<1x8x1xf32>
    %69 = vector.broadcast %68 : vector<1x8x1xf32> to vector<1x8x16xf32>
    %70 = arith.subf %66, %69 : vector<1x8x16xf32>
    %71 = math.exp %70 : vector<1x8x16xf32>
    %cst_25 = arith.constant dense<0.000000e+00> : vector<1x8xf32>
    %72 = vector.multi_reduction <add>, %71, %cst_25 [2] : vector<1x8x16xf32> to vector<1x8xf32>
    %73 = vector.shape_cast %72 : vector<1x8xf32> to vector<1x8x1xf32>
    %74 = tpu.reciprocal %73 {approx = true} : vector<1x8x1xf32> -> vector<1x8x1xf32>
    %75 = vector.broadcast %74 : vector<1x8x1xf32> to vector<1x8x16xf32>
    %76 = arith.mulf %71, %75 : vector<1x8x16xf32>
    %77 = arith.truncf %76 : vector<1x8x16xf32> to vector<1x8x16xbf16>
    %78 = vector.extract_strided_slice %61 {offsets = [0, 0, 0], sizes = [1, 16, 32], strides = [1, 1, 1]} : vector<1x16x128xf32> to vector<1x16x32xf32>
    %79 = arith.truncf %78 : vector<1x16x32xf32> to vector<1x16x32xbf16>
    "tpu.trace_start"() <{level = 10 : i32, message = "bqk,bkd->bqd"}> : () -> ()
    %cst_26 = arith.constant dense<0.000000e+00> : vector<1x8x32xf32>
    %80 = tpu.matmul %77, %79, %cst_26 {dimension_numbers = #tpu.dot_dimension_numbers<[2], [1], [1], [2], [0, 0, 0, 1, 1, 2], [0], [0]>} : vector<1x8x16xbf16>, vector<1x16x32xbf16>, vector<1x8x32xf32> -> vector<1x8x32xf32>
    "tpu.trace_stop"() : () -> ()
    %81 = vector.shape_cast %80 : vector<1x8x32xf32> to vector<8x32xf32>
    %c0_27 = arith.constant 0 : index
    %c0_28 = arith.constant 0 : index
    %82 = vector.load %arg16[%c0_27, %c0_28] : memref<8x128xf32, #tpu.memory_space<vmem>>, vector<8x32xf32>
    tpu.vector_store %arg16[%c0_27, %c0_28], %81 {strides = array<i32>} : memref<8x128xf32, #tpu.memory_space<vmem>>, vector<8x32xf32>,
    %83 = vector.extract_strided_slice %57 {offsets = [0, 0, 32], sizes = [1, 8, 32], strides = [1, 1, 1]} : vector<1x8x128xf32> to vector<1x8x32xf32>
    %84 = arith.truncf %83 : vector<1x8x32xf32> to vector<1x8x32xbf16>
    %85 = vector.extract_strided_slice %59 {offsets = [0, 0, 32], sizes = [1, 16, 32], strides = [1, 1, 1]} : vector<1x16x128xf32> to vector<1x16x32xf32>
    %86 = arith.truncf %85 : vector<1x16x32xf32> to vector<1x16x32xbf16>
    "tpu.trace_start"() <{level = 10 : i32, message = "bqd,bkd->bqk"}> : () -> ()
    %cst_29 = arith.constant dense<0.000000e+00> : vector<1x8x16xf32>
    %87 = tpu.matmul %84, %86, %cst_29 {dimension_numbers = #tpu.dot_dimension_numbers<[2], [2], [1], [1], [0, 0, 0, 1, 1, 1], [0], [0]>} : vector<1x8x32xbf16>, vector<1x16x32xbf16>, vector<1x8x16xf32> -> vector<1x8x16xf32>
    "tpu.trace_stop"() : () -> ()
    %cst_30 = arith.constant dense<0xFF800000> : vector<1x8xf32>
    %88 = vector.multi_reduction <maximumf>, %87, %cst_30 [2] : vector<1x8x16xf32> to vector<1x8xf32>
    %89 = vector.shape_cast %88 : vector<1x8xf32> to vector<1x8x1xf32>
    %90 = vector.broadcast %89 : vector<1x8x1xf32> to vector<1x8x16xf32>
    %91 = arith.subf %87, %90 : vector<1x8x16xf32>
    %92 = math.exp %91 : vector<1x8x16xf32>
    %cst_31 = arith.constant dense<0.000000e+00> : vector<1x8xf32>
    %93 = vector.multi_reduction <add>, %92, %cst_31 [2] : vector<1x8x16xf32> to vector<1x8xf32>
    %94 = vector.shape_cast %93 : vector<1x8xf32> to vector<1x8x1xf32>
    %95 = tpu.reciprocal %94 {approx = true} : vector<1x8x1xf32> -> vector<1x8x1xf32>
    %96 = vector.broadcast %95 : vector<1x8x1xf32> to vector<1x8x16xf32>
    %97 = arith.mulf %92, %96 : vector<1x8x16xf32>
    %98 = arith.truncf %97 : vector<1x8x16xf32> to vector<1x8x16xbf16>
    %99 = vector.extract_strided_slice %61 {offsets = [0, 0, 32], sizes = [1, 16, 32], strides = [1, 1, 1]} : vector<1x16x128xf32> to vector<1x16x32xf32>
    %100 = arith.truncf %99 : vector<1x16x32xf32> to vector<1x16x32xbf16>
    "tpu.trace_start"() <{level = 10 : i32, message = "bqk,bkd->bqd"}> : () -> ()
    %cst_32 = arith.constant dense<0.000000e+00> : vector<1x8x32xf32>
    %101 = tpu.matmul %98, %100, %cst_32 {dimension_numbers = #tpu.dot_dimension_numbers<[2], [1], [1], [2], [0, 0, 0, 1, 1, 2], [0], [0]>} : vector<1x8x16xbf16>, vector<1x16x32xbf16>, vector<1x8x32xf32> -> vector<1x8x32xf32>
    "tpu.trace_stop"() : () -> ()
    %102 = vector.shape_cast %101 : vector<1x8x32xf32> to vector<8x32xf32>
    %c0_33 = arith.constant 0 : index
    %c32 = arith.constant 32 : index
    %103 = vector.load %arg16[%c0_33, %c32] : memref<8x128xf32, #tpu.memory_space<vmem>>, vector<8x32xf32>
    tpu.vector_store %arg16[%c0_33, %c32], %102 {strides = array<i32>} : memref<8x128xf32, #tpu.memory_space<vmem>>, vector<8x32xf32>,
    %104 = vector.extract_strided_slice %57 {offsets = [0, 0, 64], sizes = [1, 8, 32], strides = [1, 1, 1]} : vector<1x8x128xf32> to vector<1x8x32xf32>
    %105 = arith.truncf %104 : vector<1x8x32xf32> to vector<1x8x32xbf16>
    %106 = vector.extract_strided_slice %59 {offsets = [0, 0, 64], sizes = [1, 16, 32], strides = [1, 1, 1]} : vector<1x16x128xf32> to vector<1x16x32xf32>
    %107 = arith.truncf %106 : vector<1x16x32xf32> to vector<1x16x32xbf16>
    "tpu.trace_start"() <{level = 10 : i32, message = "bqd,bkd->bqk"}> : () -> ()
    %cst_34 = arith.constant dense<0.000000e+00> : vector<1x8x16xf32>
    %108 = tpu.matmul %105, %107, %cst_34 {dimension_numbers = #tpu.dot_dimension_numbers<[2], [2], [1], [1], [0, 0, 0, 1, 1, 1], [0], [0]>} : vector<1x8x32xbf16>, vector<1x16x32xbf16>, vector<1x8x16xf32> -> vector<1x8x16xf32>
    "tpu.trace_stop"() : () -> ()
    %cst_35 = arith.constant dense<0xFF800000> : vector<1x8xf32>
    %109 = vector.multi_reduction <maximumf>, %108, %cst_35 [2] : vector<1x8x16xf32> to vector<1x8xf32>
    %110 = vector.shape_cast %109 : vector<1x8xf32> to vector<1x8x1xf32>
    %111 = vector.broadcast %110 : vector<1x8x1xf32> to vector<1x8x16xf32>
    %112 = arith.subf %108, %111 : vector<1x8x16xf32>
    %113 = math.exp %112 : vector<1x8x16xf32>
    %cst_36 = arith.constant dense<0.000000e+00> : vector<1x8xf32>
    %114 = vector.multi_reduction <add>, %113, %cst_36 [2] : vector<1x8x16xf32> to vector<1x8xf32>
    %115 = vector.shape_cast %114 : vector<1x8xf32> to vector<1x8x1xf32>
    %116 = tpu.reciprocal %115 {approx = true} : vector<1x8x1xf32> -> vector<1x8x1xf32>
    %117 = vector.broadcast %116 : vector<1x8x1xf32> to vector<1x8x16xf32>
    %118 = arith.mulf %113, %117 : vector<1x8x16xf32>
    %119 = arith.truncf %118 : vector<1x8x16xf32> to vector<1x8x16xbf16>
    %120 = vector.extract_strided_slice %61 {offsets = [0, 0, 64], sizes = [1, 16, 32], strides = [1, 1, 1]} : vector<1x16x128xf32> to vector<1x16x32xf32>
    %121 = arith.truncf %120 : vector<1x16x32xf32> to vector<1x16x32xbf16>
    "tpu.trace_start"() <{level = 10 : i32, message = "bqk,bkd->bqd"}> : () -> ()
    %cst_37 = arith.constant dense<0.000000e+00> : vector<1x8x32xf32>
    %122 = tpu.matmul %119, %121, %cst_37 {dimension_numbers = #tpu.dot_dimension_numbers<[2], [1], [1], [2], [0, 0, 0, 1, 1, 2], [0], [0]>} : vector<1x8x16xbf16>, vector<1x16x32xbf16>, vector<1x8x32xf32> -> vector<1x8x32xf32>
    "tpu.trace_stop"() : () -> ()
    %123 = vector.shape_cast %122 : vector<1x8x32xf32> to vector<8x32xf32>
    %c0_38 = arith.constant 0 : index
    %c64 = arith.constant 64 : index
    %124 = vector.load %arg16[%c0_38, %c64] : memref<8x128xf32, #tpu.memory_space<vmem>>, vector<8x32xf32>
    tpu.vector_store %arg16[%c0_38, %c64], %123 {strides = array<i32>} : memref<8x128xf32, #tpu.memory_space<vmem>>, vector<8x32xf32>,
    %125 = vector.extract_strided_slice %57 {offsets = [0, 0, 96], sizes = [1, 8, 32], strides = [1, 1, 1]} : vector<1x8x128xf32> to vector<1x8x32xf32>
    %126 = arith.truncf %125 : vector<1x8x32xf32> to vector<1x8x32xbf16>
    %127 = vector.extract_strided_slice %59 {offsets = [0, 0, 96], sizes = [1, 16, 32], strides = [1, 1, 1]} : vector<1x16x128xf32> to vector<1x16x32xf32>
    %128 = arith.truncf %127 : vector<1x16x32xf32> to vector<1x16x32xbf16>
    "tpu.trace_start"() <{level = 10 : i32, message = "bqd,bkd->bqk"}> : () -> ()
    %cst_39 = arith.constant dense<0.000000e+00> : vector<1x8x16xf32>
    %129 = tpu.matmul %126, %128, %cst_39 {dimension_numbers = #tpu.dot_dimension_numbers<[2], [2], [1], [1], [0, 0, 0, 1, 1, 1], [0], [0]>} : vector<1x8x32xbf16>, vector<1x16x32xbf16>, vector<1x8x16xf32> -> vector<1x8x16xf32>
    "tpu.trace_stop"() : () -> ()
    %cst_40 = arith.constant dense<0xFF800000> : vector<1x8xf32>
    %130 = vector.multi_reduction <maximumf>, %129, %cst_40 [2] : vector<1x8x16xf32> to vector<1x8xf32>
    %131 = vector.shape_cast %130 : vector<1x8xf32> to vector<1x8x1xf32>
    %132 = vector.broadcast %131 : vector<1x8x1xf32> to vector<1x8x16xf32>
    %133 = arith.subf %129, %132 : vector<1x8x16xf32>
    %134 = math.exp %133 : vector<1x8x16xf32>
    %cst_41 = arith.constant dense<0.000000e+00> : vector<1x8xf32>
    %135 = vector.multi_reduction <add>, %134, %cst_41 [2] : vector<1x8x16xf32> to vector<1x8xf32>
    %136 = vector.shape_cast %135 : vector<1x8xf32> to vector<1x8x1xf32>
    %137 = tpu.reciprocal %136 {approx = true} : vector<1x8x1xf32> -> vector<1x8x1xf32>
    %138 = vector.broadcast %137 : vector<1x8x1xf32> to vector<1x8x16xf32>
    %139 = arith.mulf %134, %138 : vector<1x8x16xf32>
    %140 = arith.truncf %139 : vector<1x8x16xf32> to vector<1x8x16xbf16>
    %141 = vector.extract_strided_slice %61 {offsets = [0, 0, 96], sizes = [1, 16, 32], strides = [1, 1, 1]} : vector<1x16x128xf32> to vector<1x16x32xf32>
    %142 = arith.truncf %141 : vector<1x16x32xf32> to vector<1x16x32xbf16>
    "tpu.trace_start"() <{level = 10 : i32, message = "bqk,bkd->bqd"}> : () -> ()
    %cst_42 = arith.constant dense<0.000000e+00> : vector<1x8x32xf32>
    %143 = tpu.matmul %140, %142, %cst_42 {dimension_numbers = #tpu.dot_dimension_numbers<[2], [1], [1], [2], [0, 0, 0, 1, 1, 2], [0], [0]>} : vector<1x8x16xbf16>, vector<1x16x32xbf16>, vector<1x8x32xf32> -> vector<1x8x32xf32>
    "tpu.trace_stop"() : () -> ()
    %144 = vector.shape_cast %143 : vector<1x8x32xf32> to vector<8x32xf32>
    %c0_43 = arith.constant 0 : index
    %c96 = arith.constant 96 : index
    %145 = vector.load %arg16[%c0_43, %c96] : memref<8x128xf32, #tpu.memory_space<vmem>>, vector<8x32xf32>
    tpu.vector_store %arg16[%c0_43, %c96], %144 {strides = array<i32>} : memref<8x128xf32, #tpu.memory_space<vmem>>, vector<8x32xf32>,
    %c0_44 = arith.constant 0 : index
    %c0_45 = arith.constant 0 : index
    %146 = vector.load %arg16[%c0_44, %c0_45] : memref<8x128xf32, #tpu.memory_space<vmem>>, vector<8x128xf32>
    %147 = arith.truncf %146 : vector<8x128xf32> to vector<8x128xbf16>
    %c0_46 = arith.constant 0 : index
    %c0_47 = arith.constant 0 : index
    %148 = vector.load %arg7[%c0_46, %c0_47] : memref<128x128xbf16, #tpu.memory_space<vmem>>, vector<128x128xbf16>
    %cst_48 = arith.constant dense<0.000000e+00> : vector<8x128xf32>
    %149 = tpu.matmul %147, %148, %cst_48 {dimension_numbers = #tpu.dot_dimension_numbers<[1], [0], [0], [1], [0, 0, 1, 1], [], []>} : vector<8x128xbf16>, vector<128x128xbf16>, vector<8x128xf32> -> vector<8x128xf32>
    %150 = vector.broadcast %48 : vector<1x128xf32> to vector<8x128xf32>
    %151 = arith.addf %149, %150 : vector<8x128xf32>
    %152 = arith.addf %2, %151 : vector<8x128xf32>
    %153 = vector.extract_strided_slice %0 {offsets = [5, 0], sizes = [1, 128], strides = [1, 1]} : vector<14x128xf32> to vector<1x128xf32>
    %154 = vector.extract_strided_slice %0 {offsets = [6, 0], sizes = [1, 128], strides = [1, 1]} : vector<14x128xf32> to vector<1x128xf32>
    %155 = vector.extract_strided_slice %1 {offsets = [0, 0], sizes = [1, 256], strides = [1, 1]} : vector<2x256xf32> to vector<1x256xf32>
    %156 = vector.extract_strided_slice %0 {offsets = [7, 0], sizes = [1, 128], strides = [1, 1]} : vector<14x128xf32> to vector<1x128xf32>
    %cst_49 = arith.constant dense<0.000000e+00> : vector<8xf32>
    %157 = vector.multi_reduction <add>, %152, %cst_49 [1] : vector<8x128xf32> to vector<8xf32>
    %158 = vector.shape_cast %157 : vector<8xf32> to vector<8x1xf32>
    %cst_50 = arith.constant 1.280000e+02 : f32
    %159 = vector.broadcast %cst_50 : f32 to vector<8x1xf32>
    %160 = arith.divf %158, %159 : vector<8x1xf32>
    %161 = vector.broadcast %160 : vector<8x1xf32> to vector<8x128xf32>
    %162 = arith.subf %152, %161 : vector<8x128xf32>
    %163 = arith.mulf %162, %162 : vector<8x128xf32>
    %cst_51 = arith.constant dense<0.000000e+00> : vector<8xf32>
    %164 = vector.multi_reduction <add>, %163, %cst_51 [1] : vector<8x128xf32> to vector<8xf32>
    %165 = vector.shape_cast %164 : vector<8xf32> to vector<8x1xf32>
    %cst_52 = arith.constant 1.280000e+02 : f32
    %166 = vector.broadcast %cst_52 : f32 to vector<8x1xf32>
    %167 = arith.divf %165, %166 : vector<8x1xf32>
    %cst_53 = arith.constant 9.99999974E-6 : f32
    %168 = vector.broadcast %cst_53 : f32 to vector<8x1xf32>
    %169 = arith.addf %167, %168 : vector<8x1xf32>
    %170 = math.rsqrt %169 : vector<8x1xf32>
    %171 = vector.broadcast %170 : vector<8x1xf32> to vector<8x128xf32>
    %172 = arith.mulf %162, %171 : vector<8x128xf32>
    %173 = vector.broadcast %153 : vector<1x128xf32> to vector<8x128xf32>
    %174 = arith.mulf %172, %173 : vector<8x128xf32>
    %175 = vector.broadcast %154 : vector<1x128xf32> to vector<8x128xf32>
    %176 = arith.addf %174, %175 : vector<8x128xf32>
    %177 = arith.truncf %176 : vector<8x128xf32> to vector<8x128xbf16>
    %c0_54 = arith.constant 0 : index
    %c0_55 = arith.constant 0 : index
    %178 = vector.load %arg8[%c0_54, %c0_55] : memref<128x256xbf16, #tpu.memory_space<vmem>>, vector<128x256xbf16>
    %cst_56 = arith.constant dense<0.000000e+00> : vector<8x256xf32>
    %179 = tpu.matmul %177, %178, %cst_56 {dimension_numbers = #tpu.dot_dimension_numbers<[1], [0], [0], [1], [0, 0, 1, 1], [], []>} : vector<8x128xbf16>, vector<128x256xbf16>, vector<8x256xf32> -> vector<8x256xf32>
    %180 = vector.broadcast %155 : vector<1x256xf32> to vector<8x256xf32>
    %181 = arith.addf %179, %180 : vector<8x256xf32>
    %182 = vector.extract_strided_slice %181 {offsets = [0, 0], sizes = [8, 128], strides = [1, 1]} : vector<8x256xf32> to vector<8x128xf32>
    %183 = vector.extract_strided_slice %181 {offsets = [0, 128], sizes = [8, 128], strides = [1, 1]} : vector<8x256xf32> to vector<8x128xf32>
    %184 = arith.mulf %183, %183 : vector<8x128xf32>
    %185 = arith.mulf %183, %184 : vector<8x128xf32>
    %cst_57 = arith.constant 4.471500e-02 : f32
    %186 = vector.broadcast %cst_57 : f32 to vector<8x128xf32>
    %187 = arith.mulf %186, %185 : vector<8x128xf32>
    %188 = arith.addf %183, %187 : vector<8x128xf32>
    %cst_58 = arith.constant 0.797884583 : f32
    %189 = vector.broadcast %cst_58 : f32 to vector<8x128xf32>
    %190 = arith.mulf %189, %188 : vector<8x128xf32>
    %191 = math.tanh %190 : vector<8x128xf32>
    %cst_59 = arith.constant 1.000000e+00 : f32
    %192 = vector.broadcast %cst_59 : f32 to vector<8x128xf32>
    %193 = arith.addf %192, %191 : vector<8x128xf32>
    %cst_60 = arith.constant 5.000000e-01 : f32
    %194 = vector.broadcast %cst_60 : f32 to vector<8x128xf32>
    %195 = arith.mulf %194, %193 : vector<8x128xf32>
    %196 = arith.mulf %183, %195 : vector<8x128xf32>
    %197 = arith.mulf %182, %196 : vector<8x128xf32>
    %198 = arith.truncf %197 : vector<8x128xf32> to vector<8x128xbf16>
    %c0_61 = arith.constant 0 : index
    %c0_62 = arith.constant 0 : index
    %199 = vector.load %arg9[%c0_61, %c0_62] : memref<128x128xbf16, #tpu.memory_space<vmem>>, vector<128x128xbf16>
    %cst_63 = arith.constant dense<0.000000e+00> : vector<8x128xf32>
    %200 = tpu.matmul %198, %199, %cst_63 {dimension_numbers = #tpu.dot_dimension_numbers<[1], [0], [0], [1], [0, 0, 1, 1], [], []>} : vector<8x128xbf16>, vector<128x128xbf16>, vector<8x128xf32> -> vector<8x128xf32>
    %201 = vector.broadcast %156 : vector<1x128xf32> to vector<8x128xf32>
    %202 = arith.addf %200, %201 : vector<8x128xf32>
    %203 = arith.addf %152, %202 : vector<8x128xf32>
    %204 = vector.extract_strided_slice %0 {offsets = [8, 0], sizes = [1, 128], strides = [1, 1]} : vector<14x128xf32> to vector<1x128xf32>
    %205 = vector.extract_strided_slice %0 {offsets = [9, 0], sizes = [1, 128], strides = [1, 1]} : vector<14x128xf32> to vector<1x128xf32>
    %cst_64 = arith.constant dense<0.000000e+00> : vector<8xf32>
    %206 = vector.multi_reduction <add>, %203, %cst_64 [1] : vector<8x128xf32> to vector<8xf32>
    %207 = vector.shape_cast %206 : vector<8xf32> to vector<8x1xf32>
    %cst_65 = arith.constant 1.280000e+02 : f32
    %208 = vector.broadcast %cst_65 : f32 to vector<8x1xf32>
    %209 = arith.divf %207, %208 : vector<8x1xf32>
    %210 = vector.broadcast %209 : vector<8x1xf32> to vector<8x128xf32>
    %211 = arith.subf %203, %210 : vector<8x128xf32>
    %212 = arith.mulf %211, %211 : vector<8x128xf32>
    %cst_66 = arith.constant dense<0.000000e+00> : vector<8xf32>
    %213 = vector.multi_reduction <add>, %212, %cst_66 [1] : vector<8x128xf32> to vector<8xf32>
    %214 = vector.shape_cast %213 : vector<8xf32> to vector<8x1xf32>
    %cst_67 = arith.constant 1.280000e+02 : f32
    %215 = vector.broadcast %cst_67 : f32 to vector<8x1xf32>
    %216 = arith.divf %214, %215 : vector<8x1xf32>
    %cst_68 = arith.constant 9.99999974E-6 : f32
    %217 = vector.broadcast %cst_68 : f32 to vector<8x1xf32>
    %218 = arith.addf %216, %217 : vector<8x1xf32>
    %219 = math.rsqrt %218 : vector<8x1xf32>
    %220 = vector.broadcast %219 : vector<8x1xf32> to vector<8x128xf32>
    %221 = arith.mulf %211, %220 : vector<8x128xf32>
    %222 = vector.broadcast %204 : vector<1x128xf32> to vector<8x128xf32>
    %223 = arith.mulf %221, %222 : vector<8x128xf32>
    %224 = vector.broadcast %205 : vector<1x128xf32> to vector<8x128xf32>
    %225 = arith.addf %223, %224 : vector<8x128xf32>
    %226 = vector.extract_strided_slice %0 {offsets = [10, 0], sizes = [1, 128], strides = [1, 1]} : vector<14x128xf32> to vector<1x128xf32>
    %227 = arith.truncf %225 : vector<8x128xf32> to vector<8x128xbf16>
    %c0_69 = arith.constant 0 : index
    %c0_70 = arith.constant 0 : index
    %228 = vector.load %arg10[%c0_69, %c0_70] : memref<128x128xbf16, #tpu.memory_space<vmem>>, vector<128x128xbf16>
    %cst_71 = arith.constant dense<0.000000e+00> : vector<8x128xf32>
    %229 = tpu.matmul %227, %228, %cst_71 {dimension_numbers = #tpu.dot_dimension_numbers<[1], [0], [0], [1], [0, 0, 1, 1], [], []>} : vector<8x128xbf16>, vector<128x128xbf16>, vector<8x128xf32> -> vector<8x128xf32>
    %cst_72 = arith.constant 0.176776692 : f32
    %230 = vector.broadcast %cst_72 : f32 to vector<8x128xf32>
    %231 = arith.mulf %229, %230 : vector<8x128xf32>
    %232 = arith.truncf %225 : vector<8x128xf32> to vector<8x128xbf16>
    %c0_73 = arith.constant 0 : index
    %c0_74 = arith.constant 0 : index
    %233 = vector.load %arg11[%c0_73, %c0_74] : memref<128x256xbf16, #tpu.memory_space<vmem>>, vector<128x256xbf16>
    %cst_75 = arith.constant dense<0.000000e+00> : vector<8x256xf32>
    %234 = tpu.matmul %232, %233, %cst_75 {dimension_numbers = #tpu.dot_dimension_numbers<[1], [0], [0], [1], [0, 0, 1, 1], [], []>} : vector<8x128xbf16>, vector<128x256xbf16>, vector<8x256xf32> -> vector<8x256xf32>
    %235 = vector.shape_cast %231 : vector<8x128xf32> to vector<1x8x128xf32>
    %236 = vector.extract_strided_slice %234 {offsets = [0, 0], sizes = [8, 128], strides = [1, 1]} : vector<8x256xf32> to vector<8x128xf32>
    %237 = vector.shape_cast %236 : vector<8x128xf32> to vector<1x8x128xf32>
    %238 = vector.extract_strided_slice %234 {offsets = [0, 128], sizes = [8, 128], strides = [1, 1]} : vector<8x256xf32> to vector<8x128xf32>
    %239 = vector.shape_cast %238 : vector<8x128xf32> to vector<1x8x128xf32>
    %240 = vector.extract_strided_slice %235 {offsets = [0, 0, 0], sizes = [1, 8, 32], strides = [1, 1, 1]} : vector<1x8x128xf32> to vector<1x8x32xf32>
    %241 = arith.truncf %240 : vector<1x8x32xf32> to vector<1x8x32xbf16>
    %242 = vector.extract_strided_slice %237 {offsets = [0, 0, 0], sizes = [1, 8, 32], strides = [1, 1, 1]} : vector<1x8x128xf32> to vector<1x8x32xf32>
    %243 = arith.truncf %242 : vector<1x8x32xf32> to vector<1x8x32xbf16>
    "tpu.trace_start"() <{level = 10 : i32, message = "bqd,bkd->bqk"}> : () -> ()
    %cst_76 = arith.constant dense<0.000000e+00> : vector<1x8x8xf32>
    %244 = tpu.matmul %241, %243, %cst_76 {dimension_numbers = #tpu.dot_dimension_numbers<[2], [2], [1], [1], [0, 0, 0, 1, 1, 1], [0], [0]>} : vector<1x8x32xbf16>, vector<1x8x32xbf16>, vector<1x8x8xf32> -> vector<1x8x8xf32>
    "tpu.trace_stop"() : () -> ()
    %cst_77 = arith.constant dense<0xFF800000> : vector<1x8xf32>
    %245 = vector.multi_reduction <maximumf>, %244, %cst_77 [2] : vector<1x8x8xf32> to vector<1x8xf32>
    %246 = vector.shape_cast %245 : vector<1x8xf32> to vector<1x8x1xf32>
    %247 = vector.broadcast %246 : vector<1x8x1xf32> to vector<1x8x8xf32>
    %248 = arith.subf %244, %247 : vector<1x8x8xf32>
    %249 = math.exp %248 : vector<1x8x8xf32>
    %cst_78 = arith.constant dense<0.000000e+00> : vector<1x8xf32>
    %250 = vector.multi_reduction <add>, %249, %cst_78 [2] : vector<1x8x8xf32> to vector<1x8xf32>
    %251 = vector.shape_cast %250 : vector<1x8xf32> to vector<1x8x1xf32>
    %252 = tpu.reciprocal %251 {approx = true} : vector<1x8x1xf32> -> vector<1x8x1xf32>
    %253 = vector.broadcast %252 : vector<1x8x1xf32> to vector<1x8x8xf32>
    %254 = arith.mulf %249, %253 : vector<1x8x8xf32>
    %255 = arith.truncf %254 : vector<1x8x8xf32> to vector<1x8x8xbf16>
    %256 = vector.extract_strided_slice %239 {offsets = [0, 0, 0], sizes = [1, 8, 32], strides = [1, 1, 1]} : vector<1x8x128xf32> to vector<1x8x32xf32>
    %257 = arith.truncf %256 : vector<1x8x32xf32> to vector<1x8x32xbf16>
    "tpu.trace_start"() <{level = 10 : i32, message = "bqk,bkd->bqd"}> : () -> ()
    %cst_79 = arith.constant dense<0.000000e+00> : vector<1x8x32xf32>
    %258 = tpu.matmul %255, %257, %cst_79 {dimension_numbers = #tpu.dot_dimension_numbers<[2], [1], [1], [2], [0, 0, 0, 1, 1, 2], [0], [0]>} : vector<1x8x8xbf16>, vector<1x8x32xbf16>, vector<1x8x32xf32> -> vector<1x8x32xf32>
    "tpu.trace_stop"() : () -> ()
    %259 = vector.shape_cast %258 : vector<1x8x32xf32> to vector<8x32xf32>
    %c0_80 = arith.constant 0 : index
    %c0_81 = arith.constant 0 : index
    %260 = vector.load %arg16[%c0_80, %c0_81] : memref<8x128xf32, #tpu.memory_space<vmem>>, vector<8x32xf32>
    tpu.vector_store %arg16[%c0_80, %c0_81], %259 {strides = array<i32>} : memref<8x128xf32, #tpu.memory_space<vmem>>, vector<8x32xf32>,
    %261 = vector.extract_strided_slice %235 {offsets = [0, 0, 32], sizes = [1, 8, 32], strides = [1, 1, 1]} : vector<1x8x128xf32> to vector<1x8x32xf32>
    %262 = arith.truncf %261 : vector<1x8x32xf32> to vector<1x8x32xbf16>
    %263 = vector.extract_strided_slice %237 {offsets = [0, 0, 32], sizes = [1, 8, 32], strides = [1, 1, 1]} : vector<1x8x128xf32> to vector<1x8x32xf32>
    %264 = arith.truncf %263 : vector<1x8x32xf32> to vector<1x8x32xbf16>
    "tpu.trace_start"() <{level = 10 : i32, message = "bqd,bkd->bqk"}> : () -> ()
    %cst_82 = arith.constant dense<0.000000e+00> : vector<1x8x8xf32>
    %265 = tpu.matmul %262, %264, %cst_82 {dimension_numbers = #tpu.dot_dimension_numbers<[2], [2], [1], [1], [0, 0, 0, 1, 1, 1], [0], [0]>} : vector<1x8x32xbf16>, vector<1x8x32xbf16>, vector<1x8x8xf32> -> vector<1x8x8xf32>
    "tpu.trace_stop"() : () -> ()
    %cst_83 = arith.constant dense<0xFF800000> : vector<1x8xf32>
    %266 = vector.multi_reduction <maximumf>, %265, %cst_83 [2] : vector<1x8x8xf32> to vector<1x8xf32>
    %267 = vector.shape_cast %266 : vector<1x8xf32> to vector<1x8x1xf32>
    %268 = vector.broadcast %267 : vector<1x8x1xf32> to vector<1x8x8xf32>
    %269 = arith.subf %265, %268 : vector<1x8x8xf32>
    %270 = math.exp %269 : vector<1x8x8xf32>
    %cst_84 = arith.constant dense<0.000000e+00> : vector<1x8xf32>
    %271 = vector.multi_reduction <add>, %270, %cst_84 [2] : vector<1x8x8xf32> to vector<1x8xf32>
    %272 = vector.shape_cast %271 : vector<1x8xf32> to vector<1x8x1xf32>
    %273 = tpu.reciprocal %272 {approx = true} : vector<1x8x1xf32> -> vector<1x8x1xf32>
    %274 = vector.broadcast %273 : vector<1x8x1xf32> to vector<1x8x8xf32>
    %275 = arith.mulf %270, %274 : vector<1x8x8xf32>
    %276 = arith.truncf %275 : vector<1x8x8xf32> to vector<1x8x8xbf16>
    %277 = vector.extract_strided_slice %239 {offsets = [0, 0, 32], sizes = [1, 8, 32], strides = [1, 1, 1]} : vector<1x8x128xf32> to vector<1x8x32xf32>
    %278 = arith.truncf %277 : vector<1x8x32xf32> to vector<1x8x32xbf16>
    "tpu.trace_start"() <{level = 10 : i32, message = "bqk,bkd->bqd"}> : () -> ()
    %cst_85 = arith.constant dense<0.000000e+00> : vector<1x8x32xf32>
    %279 = tpu.matmul %276, %278, %cst_85 {dimension_numbers = #tpu.dot_dimension_numbers<[2], [1], [1], [2], [0, 0, 0, 1, 1, 2], [0], [0]>} : vector<1x8x8xbf16>, vector<1x8x32xbf16>, vector<1x8x32xf32> -> vector<1x8x32xf32>
    "tpu.trace_stop"() : () -> ()
    %280 = vector.shape_cast %279 : vector<1x8x32xf32> to vector<8x32xf32>
    %c0_86 = arith.constant 0 : index
    %c32_87 = arith.constant 32 : index
    %281 = vector.load %arg16[%c0_86, %c32_87] : memref<8x128xf32, #tpu.memory_space<vmem>>, vector<8x32xf32>
    tpu.vector_store %arg16[%c0_86, %c32_87], %280 {strides = array<i32>} : memref<8x128xf32, #tpu.memory_space<vmem>>, vector<8x32xf32>,
    %282 = vector.extract_strided_slice %235 {offsets = [0, 0, 64], sizes = [1, 8, 32], strides = [1, 1, 1]} : vector<1x8x128xf32> to vector<1x8x32xf32>
    %283 = arith.truncf %282 : vector<1x8x32xf32> to vector<1x8x32xbf16>
    %284 = vector.extract_strided_slice %237 {offsets = [0, 0, 64], sizes = [1, 8, 32], strides = [1, 1, 1]} : vector<1x8x128xf32> to vector<1x8x32xf32>
    %285 = arith.truncf %284 : vector<1x8x32xf32> to vector<1x8x32xbf16>
    "tpu.trace_start"() <{level = 10 : i32, message = "bqd,bkd->bqk"}> : () -> ()
    %cst_88 = arith.constant dense<0.000000e+00> : vector<1x8x8xf32>
    %286 = tpu.matmul %283, %285, %cst_88 {dimension_numbers = #tpu.dot_dimension_numbers<[2], [2], [1], [1], [0, 0, 0, 1, 1, 1], [0], [0]>} : vector<1x8x32xbf16>, vector<1x8x32xbf16>, vector<1x8x8xf32> -> vector<1x8x8xf32>
    "tpu.trace_stop"() : () -> ()
    %cst_89 = arith.constant dense<0xFF800000> : vector<1x8xf32>
    %287 = vector.multi_reduction <maximumf>, %286, %cst_89 [2] : vector<1x8x8xf32> to vector<1x8xf32>
    %288 = vector.shape_cast %287 : vector<1x8xf32> to vector<1x8x1xf32>
    %289 = vector.broadcast %288 : vector<1x8x1xf32> to vector<1x8x8xf32>
    %290 = arith.subf %286, %289 : vector<1x8x8xf32>
    %291 = math.exp %290 : vector<1x8x8xf32>
    %cst_90 = arith.constant dense<0.000000e+00> : vector<1x8xf32>
    %292 = vector.multi_reduction <add>, %291, %cst_90 [2] : vector<1x8x8xf32> to vector<1x8xf32>
    %293 = vector.shape_cast %292 : vector<1x8xf32> to vector<1x8x1xf32>
    %294 = tpu.reciprocal %293 {approx = true} : vector<1x8x1xf32> -> vector<1x8x1xf32>
    %295 = vector.broadcast %294 : vector<1x8x1xf32> to vector<1x8x8xf32>
    %296 = arith.mulf %291, %295 : vector<1x8x8xf32>
    %297 = arith.truncf %296 : vector<1x8x8xf32> to vector<1x8x8xbf16>
    %298 = vector.extract_strided_slice %239 {offsets = [0, 0, 64], sizes = [1, 8, 32], strides = [1, 1, 1]} : vector<1x8x128xf32> to vector<1x8x32xf32>
    %299 = arith.truncf %298 : vector<1x8x32xf32> to vector<1x8x32xbf16>
    "tpu.trace_start"() <{level = 10 : i32, message = "bqk,bkd->bqd"}> : () -> ()
    %cst_91 = arith.constant dense<0.000000e+00> : vector<1x8x32xf32>
    %300 = tpu.matmul %297, %299, %cst_91 {dimension_numbers = #tpu.dot_dimension_numbers<[2], [1], [1], [2], [0, 0, 0, 1, 1, 2], [0], [0]>} : vector<1x8x8xbf16>, vector<1x8x32xbf16>, vector<1x8x32xf32> -> vector<1x8x32xf32>
    "tpu.trace_stop"() : () -> ()
    %301 = vector.shape_cast %300 : vector<1x8x32xf32> to vector<8x32xf32>
    %c0_92 = arith.constant 0 : index
    %c64_93 = arith.constant 64 : index
    %302 = vector.load %arg16[%c0_92, %c64_93] : memref<8x128xf32, #tpu.memory_space<vmem>>, vector<8x32xf32>
    tpu.vector_store %arg16[%c0_92, %c64_93], %301 {strides = array<i32>} : memref<8x128xf32, #tpu.memory_space<vmem>>, vector<8x32xf32>,
    %303 = vector.extract_strided_slice %235 {offsets = [0, 0, 96], sizes = [1, 8, 32], strides = [1, 1, 1]} : vector<1x8x128xf32> to vector<1x8x32xf32>
    %304 = arith.truncf %303 : vector<1x8x32xf32> to vector<1x8x32xbf16>
    %305 = vector.extract_strided_slice %237 {offsets = [0, 0, 96], sizes = [1, 8, 32], strides = [1, 1, 1]} : vector<1x8x128xf32> to vector<1x8x32xf32>
    %306 = arith.truncf %305 : vector<1x8x32xf32> to vector<1x8x32xbf16>
    "tpu.trace_start"() <{level = 10 : i32, message = "bqd,bkd->bqk"}> : () -> ()
    %cst_94 = arith.constant dense<0.000000e+00> : vector<1x8x8xf32>
    %307 = tpu.matmul %304, %306, %cst_94 {dimension_numbers = #tpu.dot_dimension_numbers<[2], [2], [1], [1], [0, 0, 0, 1, 1, 1], [0], [0]>} : vector<1x8x32xbf16>, vector<1x8x32xbf16>, vector<1x8x8xf32> -> vector<1x8x8xf32>
    "tpu.trace_stop"() : () -> ()
    %cst_95 = arith.constant dense<0xFF800000> : vector<1x8xf32>
    %308 = vector.multi_reduction <maximumf>, %307, %cst_95 [2] : vector<1x8x8xf32> to vector<1x8xf32>
    %309 = vector.shape_cast %308 : vector<1x8xf32> to vector<1x8x1xf32>
    %310 = vector.broadcast %309 : vector<1x8x1xf32> to vector<1x8x8xf32>
    %311 = arith.subf %307, %310 : vector<1x8x8xf32>
    %312 = math.exp %311 : vector<1x8x8xf32>
    %cst_96 = arith.constant dense<0.000000e+00> : vector<1x8xf32>
    %313 = vector.multi_reduction <add>, %312, %cst_96 [2] : vector<1x8x8xf32> to vector<1x8xf32>
    %314 = vector.shape_cast %313 : vector<1x8xf32> to vector<1x8x1xf32>
    %315 = tpu.reciprocal %314 {approx = true} : vector<1x8x1xf32> -> vector<1x8x1xf32>
    %316 = vector.broadcast %315 : vector<1x8x1xf32> to vector<1x8x8xf32>
    %317 = arith.mulf %312, %316 : vector<1x8x8xf32>
    %318 = arith.truncf %317 : vector<1x8x8xf32> to vector<1x8x8xbf16>
    %319 = vector.extract_strided_slice %239 {offsets = [0, 0, 96], sizes = [1, 8, 32], strides = [1, 1, 1]} : vector<1x8x128xf32> to vector<1x8x32xf32>
    %320 = arith.truncf %319 : vector<1x8x32xf32> to vector<1x8x32xbf16>
    "tpu.trace_start"() <{level = 10 : i32, message = "bqk,bkd->bqd"}> : () -> ()
    %cst_97 = arith.constant dense<0.000000e+00> : vector<1x8x32xf32>
    %321 = tpu.matmul %318, %320, %cst_97 {dimension_numbers = #tpu.dot_dimension_numbers<[2], [1], [1], [2], [0, 0, 0, 1, 1, 2], [0], [0]>} : vector<1x8x8xbf16>, vector<1x8x32xbf16>, vector<1x8x32xf32> -> vector<1x8x32xf32>
    "tpu.trace_stop"() : () -> ()
    %322 = vector.shape_cast %321 : vector<1x8x32xf32> to vector<8x32xf32>
    %c0_98 = arith.constant 0 : index
    %c96_99 = arith.constant 96 : index
    %323 = vector.load %arg16[%c0_98, %c96_99] : memref<8x128xf32, #tpu.memory_space<vmem>>, vector<8x32xf32>
    tpu.vector_store %arg16[%c0_98, %c96_99], %322 {strides = array<i32>} : memref<8x128xf32, #tpu.memory_space<vmem>>, vector<8x32xf32>,
    %c0_100 = arith.constant 0 : index
    %c0_101 = arith.constant 0 : index
    %324 = vector.load %arg16[%c0_100, %c0_101] : memref<8x128xf32, #tpu.memory_space<vmem>>, vector<8x128xf32>
    %325 = arith.truncf %324 : vector<8x128xf32> to vector<8x128xbf16>
    %c0_102 = arith.constant 0 : index
    %c0_103 = arith.constant 0 : index
    %326 = vector.load %arg12[%c0_102, %c0_103] : memref<128x128xbf16, #tpu.memory_space<vmem>>, vector<128x128xbf16>
    %cst_104 = arith.constant dense<0.000000e+00> : vector<8x128xf32>
    %327 = tpu.matmul %325, %326, %cst_104 {dimension_numbers = #tpu.dot_dimension_numbers<[1], [0], [0], [1], [0, 0, 1, 1], [], []>} : vector<8x128xbf16>, vector<128x128xbf16>, vector<8x128xf32> -> vector<8x128xf32>
    %328 = vector.broadcast %226 : vector<1x128xf32> to vector<8x128xf32>
    %329 = arith.addf %327, %328 : vector<8x128xf32>
    %330 = arith.addf %203, %329 : vector<8x128xf32>
    %331 = vector.extract_strided_slice %0 {offsets = [11, 0], sizes = [1, 128], strides = [1, 1]} : vector<14x128xf32> to vector<1x128xf32>
    %332 = vector.extract_strided_slice %0 {offsets = [12, 0], sizes = [1, 128], strides = [1, 1]} : vector<14x128xf32> to vector<1x128xf32>
    %333 = vector.extract_strided_slice %1 {offsets = [1, 0], sizes = [1, 256], strides = [1, 1]} : vector<2x256xf32> to vector<1x256xf32>
    %334 = vector.extract_strided_slice %0 {offsets = [13, 0], sizes = [1, 128], strides = [1, 1]} : vector<14x128xf32> to vector<1x128xf32>
    %cst_105 = arith.constant dense<0.000000e+00> : vector<8xf32>
    %335 = vector.multi_reduction <add>, %330, %cst_105 [1] : vector<8x128xf32> to vector<8xf32>
    %336 = vector.shape_cast %335 : vector<8xf32> to vector<8x1xf32>
    %cst_106 = arith.constant 1.280000e+02 : f32
    %337 = vector.broadcast %cst_106 : f32 to vector<8x1xf32>
    %338 = arith.divf %336, %337 : vector<8x1xf32>
    %339 = vector.broadcast %338 : vector<8x1xf32> to vector<8x128xf32>
    %340 = arith.subf %330, %339 : vector<8x128xf32>
    %341 = arith.mulf %340, %340 : vector<8x128xf32>
    %cst_107 = arith.constant dense<0.000000e+00> : vector<8xf32>
    %342 = vector.multi_reduction <add>, %341, %cst_107 [1] : vector<8x128xf32> to vector<8xf32>
    %343 = vector.shape_cast %342 : vector<8xf32> to vector<8x1xf32>
    %cst_108 = arith.constant 1.280000e+02 : f32
    %344 = vector.broadcast %cst_108 : f32 to vector<8x1xf32>
    %345 = arith.divf %343, %344 : vector<8x1xf32>
    %cst_109 = arith.constant 9.99999974E-6 : f32
    %346 = vector.broadcast %cst_109 : f32 to vector<8x1xf32>
    %347 = arith.addf %345, %346 : vector<8x1xf32>
    %348 = math.rsqrt %347 : vector<8x1xf32>
    %349 = vector.broadcast %348 : vector<8x1xf32> to vector<8x128xf32>
    %350 = arith.mulf %340, %349 : vector<8x128xf32>
    %351 = vector.broadcast %331 : vector<1x128xf32> to vector<8x128xf32>
    %352 = arith.mulf %350, %351 : vector<8x128xf32>
    %353 = vector.broadcast %332 : vector<1x128xf32> to vector<8x128xf32>
    %354 = arith.addf %352, %353 : vector<8x128xf32>
    %355 = arith.truncf %354 : vector<8x128xf32> to vector<8x128xbf16>
    %c0_110 = arith.constant 0 : index
    %c0_111 = arith.constant 0 : index
    %356 = vector.load %arg13[%c0_110, %c0_111] : memref<128x256xbf16, #tpu.memory_space<vmem>>, vector<128x256xbf16>
    %cst_112 = arith.constant dense<0.000000e+00> : vector<8x256xf32>
    %357 = tpu.matmul %355, %356, %cst_112 {dimension_numbers = #tpu.dot_dimension_numbers<[1], [0], [0], [1], [0, 0, 1, 1], [], []>} : vector<8x128xbf16>, vector<128x256xbf16>, vector<8x256xf32> -> vector<8x256xf32>
    %358 = vector.broadcast %333 : vector<1x256xf32> to vector<8x256xf32>
    %359 = arith.addf %357, %358 : vector<8x256xf32>
    %360 = vector.extract_strided_slice %359 {offsets = [0, 0], sizes = [8, 128], strides = [1, 1]} : vector<8x256xf32> to vector<8x128xf32>
    %361 = vector.extract_strided_slice %359 {offsets = [0, 128], sizes = [8, 128], strides = [1, 1]} : vector<8x256xf32> to vector<8x128xf32>
    %362 = arith.mulf %361, %361 : vector<8x128xf32>
    %363 = arith.mulf %361, %362 : vector<8x128xf32>
    %cst_113 = arith.constant 4.471500e-02 : f32
    %364 = vector.broadcast %cst_113 : f32 to vector<8x128xf32>
    %365 = arith.mulf %364, %363 : vector<8x128xf32>
    %366 = arith.addf %361, %365 : vector<8x128xf32>
    %cst_114 = arith.constant 0.797884583 : f32
    %367 = vector.broadcast %cst_114 : f32 to vector<8x128xf32>
    %368 = arith.mulf %367, %366 : vector<8x128xf32>
    %369 = math.tanh %368 : vector<8x128xf32>
    %cst_115 = arith.constant 1.000000e+00 : f32
    %370 = vector.broadcast %cst_115 : f32 to vector<8x128xf32>
    %371 = arith.addf %370, %369 : vector<8x128xf32>
    %cst_116 = arith.constant 5.000000e-01 : f32
    %372 = vector.broadcast %cst_116 : f32 to vector<8x128xf32>
    %373 = arith.mulf %372, %371 : vector<8x128xf32>
    %374 = arith.mulf %361, %373 : vector<8x128xf32>
    %375 = arith.mulf %360, %374 : vector<8x128xf32>
    %376 = arith.truncf %375 : vector<8x128xf32> to vector<8x128xbf16>
    %c0_117 = arith.constant 0 : index
    %c0_118 = arith.constant 0 : index
    %377 = vector.load %arg14[%c0_117, %c0_118] : memref<128x128xbf16, #tpu.memory_space<vmem>>, vector<128x128xbf16>
    %cst_119 = arith.constant dense<0.000000e+00> : vector<8x128xf32>
    %378 = tpu.matmul %376, %377, %cst_119 {dimension_numbers = #tpu.dot_dimension_numbers<[1], [0], [0], [1], [0, 0, 1, 1], [], []>} : vector<8x128xbf16>, vector<128x128xbf16>, vector<8x128xf32> -> vector<8x128xf32>
    %379 = vector.broadcast %334 : vector<1x128xf32> to vector<8x128xf32>
    %380 = arith.addf %378, %379 : vector<8x128xf32>
    %381 = arith.addf %330, %380 : vector<8x128xf32>
    %c0_120 = arith.constant 0 : index
    %c0_121 = arith.constant 0 : index
    %382 = vector.load %arg15[%c0_120, %c0_121] : memref<8x128xf32, #tpu.memory_space<vmem>>, vector<8x128xf32>
    tpu.vector_store %arg15[%c0_120, %c0_121], %381 {strides = array<i32>} : memref<8x128xf32, #tpu.memory_space<vmem>>, vector<8x128xf32>,
    return
  }
  func.func @transform_0(%arg0: i32) -> (i32, i32) {
    %c0_i32 = arith.constant 0 : i32
    %c0_i32_0 = arith.constant 0 : i32
    return %arg0, %c0_i32 : i32, i32
  }
  func.func @transform_1(%arg0: i32) -> (i32, i32) {
    %c0_i32 = arith.constant 0 : i32
    %c0_i32_0 = arith.constant 0 : i32
    return %arg0, %c0_i32 : i32, i32
  }
  func.func @transform_2(%arg0: i32) -> (i32, i32) {
    %c0_i32 = arith.constant 0 : i32
    %c0_i32_0 = arith.constant 0 : i32
    %c0_i32_1 = arith.constant 0 : i32
    return %c0_i32, %c0_i32_0 : i32, i32
  }
  func.func @transform_3(%arg0: i32) -> (i32, i32) {
    %c0_i32 = arith.constant 0 : i32
    %c0_i32_0 = arith.constant 0 : i32
    %c0_i32_1 = arith.constant 0 : i32
    return %c0_i32, %c0_i32_0 : i32, i32
  }
  func.func @transform_4(%arg0: i32) -> (i32, i32) {
    %c0_i32 = arith.constant 0 : i32
    %c0_i32_0 = arith.constant 0 : i32
    %c0_i32_1 = arith.constant 0 : i32
    return %c0_i32, %c0_i32_0 : i32, i32
  }
  func.func @transform_5(%arg0: i32) -> (i32, i32) {
    %c0_i32 = arith.constant 0 : i32
    %c0_i32_0 = arith.constant 0 : i32
    %c0_i32_1 = arith.constant 0 : i32
    return %c0_i32, %c0_i32_0 : i32, i32
  }
  func.func @transform_6(%arg0: i32) -> (i32, i32) {
    %c0_i32 = arith.constant 0 : i32
    %c0_i32_0 = arith.constant 0 : i32
    %c0_i32_1 = arith.constant 0 : i32
    return %c0_i32, %c0_i32_0 : i32, i32
  }
  func.func @transform_7(%arg0: i32) -> (i32, i32) {
    %c0_i32 = arith.constant 0 : i32
    %c0_i32_0 = arith.constant 0 : i32
    %c0_i32_1 = arith.constant 0 : i32
    return %c0_i32, %c0_i32_0 : i32, i32
  }
  func.func @transform_8(%arg0: i32) -> (i32, i32) {
    %c0_i32 = arith.constant 0 : i32
    %c0_i32_0 = arith.constant 0 : i32
    %c0_i32_1 = arith.constant 0 : i32
    return %c0_i32, %c0_i32_0 : i32, i32
  }
  func.func @transform_9(%arg0: i32) -> (i32, i32) {
    %c0_i32 = arith.constant 0 : i32
    %c0_i32_0 = arith.constant 0 : i32
    %c0_i32_1 = arith.constant 0 : i32
    return %c0_i32, %c0_i32_0 : i32, i32
  }
  func.func @transform_10(%arg0: i32) -> (i32, i32) {
    %c0_i32 = arith.constant 0 : i32
    %c0_i32_0 = arith.constant 0 : i32
    %c0_i32_1 = arith.constant 0 : i32
    return %c0_i32, %c0_i32_0 : i32, i32
  }
  func.func @transform_11(%arg0: i32) -> (i32, i32) {
    %c0_i32 = arith.constant 0 : i32
    %c0_i32_0 = arith.constant 0 : i32
    %c0_i32_1 = arith.constant 0 : i32
    return %c0_i32, %c0_i32_0 : i32, i32
  }
  func.func @transform_12(%arg0: i32) -> (i32, i32) {
    %c0_i32 = arith.constant 0 : i32
    %c0_i32_0 = arith.constant 0 : i32
    %c0_i32_1 = arith.constant 0 : i32
    return %c0_i32, %c0_i32_0 : i32, i32
  }
  func.func @transform_13(%arg0: i32) -> (i32, i32) {
    %c0_i32 = arith.constant 0 : i32
    %c0_i32_0 = arith.constant 0 : i32
    %c0_i32_1 = arith.constant 0 : i32
    return %c0_i32, %c0_i32_0 : i32, i32
  }
  func.func @transform_14(%arg0: i32) -> (i32, i32) {
    %c0_i32 = arith.constant 0 : i32
    %c0_i32_0 = arith.constant 0 : i32
    return %arg0, %c0_i32 : i32, i32
  }
}

</mosaic_0001>

<llo_original>
// kernel: lbanp_encoder_layer.1
$region0: #{lbanp_encoder_layer.1}
  #allocation0 [shape = 'u32[]', space=smem, size = 0x4, offset = 0x4, fixed_abs, tag = 'smem constant byte address 0x4 - core index']
  #allocation1 [shape = 'u32[72,128]{1,0:T(1,128)}', space=vmem, size = 0x9000, scoped, tag = 'internal scratch']
  #allocation2 [shape = 'f32[8,128]{1,0:T(8,128)}', space=vmem, size = 0x1000, scoped, tag = 'scratch operand']
  %s0 = inlined_call_operand.vmem [shape: f32[16,128], index: 0, kind: input, shape index: {}]
  %s1 = inlined_call_operand.vmem [shape: f32[32,128], index: 1, kind: input, shape index: {}]
  %s2 = inlined_call_operand.vmem [shape: f32[14,128], index: 2, kind: input, shape index: {}]
  %s3 = inlined_call_operand.vmem [shape: f32[2,256], index: 3, kind: input, shape index: {}]
  %s4 = inlined_call_operand.vmem [shape: bf16[128,128], index: 4, kind: input, shape index: {}]
  %s5 = inlined_call_operand.vmem [shape: bf16[128,256], index: 5, kind: input, shape index: {}]
  %s6 = inlined_call_operand.vmem [shape: bf16[128,128], index: 6, kind: input, shape index: {}]
  %s7 = inlined_call_operand.vmem [shape: bf16[128,256], index: 7, kind: input, shape index: {}]
  %s8 = inlined_call_operand.vmem [shape: bf16[128,128], index: 8, kind: input, shape index: {}]
  %s9 = inlined_call_operand.vmem [shape: bf16[128,128], index: 9, kind: input, shape index: {}]
  %s10 = inlined_call_operand.vmem [shape: bf16[128,256], index: 10, kind: input, shape index: {}]
  %s11 = inlined_call_operand.vmem [shape: bf16[128,128], index: 11, kind: input, shape index: {}]
  %s12 = inlined_call_operand.vmem [shape: bf16[128,256], index: 12, kind: input, shape index: {}]
  %s13 = inlined_call_operand.vmem [shape: bf16[128,128], index: 13, kind: input, shape index: {}]
  %s14 = inlined_call_operand.hbm [shape: f32[16,128], index: 14, kind: output, shape index: {}]
  %s15 = sld [smem:[#allocation0]]
  $region89: #{lbanp_encoder_layer.1} parent=0
    _
  %s17 = ssub.s32 1, %s15
  %s18 = scalar_select 0, %s17, %s15
  $region1: #{lbanp_encoder_layer.1} parent=0
    #allocation3 [shape = 'u8[8192]{0}', space=vmem, size = 0x2000, scoped, tag = 'output window, operand 0']
    #allocation4 [shape = 's32[2]{0}', space=sflag, size = 0x8, scoped, tag = 'scoped memory for lbanp_encoder_layer.1']
    %19 = vsyncpa [#allocation4], 0
    %s20 = scalar_lea.sflag [#allocation4], 1
    %21 = vsyncpa %s20, 0
    loop: start=0, step=1, limit=4
    $region2: #{lbanp_encoder_layer.1} parent=1 // loop_pre_header
      _
    $region3: #{lbanp_encoder_layer.1} parent=1 // loop_header
      %s23 = sphi 0, %s27
      %p24 = scmp.ge.s32.totalorder %s23, 4
      %s33 = sphi 0, %s35
      %s36 = sphi 0, %s33
      %s37 = sphi 0, %s36
      %s53 = sphi 0, %s37
      %s59 = sphi 0, %s61
      %s62 = sphi 0, %s59
      %s63 = sphi 0, %s62
      %s79 = sphi 0, %s63
      %s83 = sphi 0, %s83
      %s85 = sphi 0, %s83
      %s86 = sphi 0, %s85
      %s100 = sphi 0, %s86
      %s104 = sphi 0, %s104
      %s106 = sphi 0, %s104
      %s107 = sphi 0, %s106
      %s121 = sphi 0, %s107
      %s125 = sphi 0, %s125
      %s127 = sphi 0, %s125
      %s128 = sphi 0, %s127
      %s142 = sphi 0, %s128
      %s146 = sphi 0, %s146
      %s148 = sphi 0, %s146
      %s149 = sphi 0, %s148
      %s163 = sphi 0, %s149
      %s167 = sphi 0, %s167
      %s169 = sphi 0, %s167
      %s170 = sphi 0, %s169
      %s184 = sphi 0, %s170
      %s188 = sphi 0, %s188
      %s190 = sphi 0, %s188
      %s191 = sphi 0, %s190
      %s205 = sphi 0, %s191
      %s209 = sphi 0, %s209
      %s211 = sphi 0, %s209
      %s212 = sphi 0, %s211
      %s226 = sphi 0, %s212
      %s230 = sphi 0, %s230
      %s232 = sphi 0, %s230
      %s233 = sphi 0, %s232
      %s247 = sphi 0, %s233
      %s251 = sphi 0, %s251
      %s253 = sphi 0, %s251
      %s254 = sphi 0, %s253
      %s268 = sphi 0, %s254
      %s272 = sphi 0, %s272
      %s274 = sphi 0, %s272
      %s275 = sphi 0, %s274
      %s289 = sphi 0, %s275
      %s293 = sphi 0, %s293
      %s295 = sphi 0, %s293
      %s296 = sphi 0, %s295
      %s310 = sphi 0, %s296
      %s314 = sphi 0, %s314
      %s316 = sphi 0, %s314
      %s317 = sphi 0, %s316
      %s331 = sphi 0, %s317
      %s337 = sphi 0, %s339
      %s340 = sphi 0, %s337
      %s341 = sphi 0, %s340
      %s357 = sphi 0, %s341
    $region4: #{lbanp_encoder_layer.1} parent=1 // loop_header_branch
      %26 = sbr.rel (%p24) target = $region8
    $region5: #{lbanp_encoder_layer.1} parent=1 // loop_body
      %s28 = ssub.s32 %s23, 1
      %s29 = ssub.s32 %s23, 2
      %s30 = sadd.s32 %s23, 1
      %s31 = ssub.s32 %s23, %s30
      %p32 = scmp.eq.s32.totalorder %s31, 0
      %s34 = sadd.s32 %s33, 1
      %s35 = scalar_select %p32, %s33, %s34
      %p38 = pneg %p32
      %p39 = scmp.eq.s32.totalorder %s23, 1
      %p40 = por %p38, %p39
      %p41 = scmp.ne.s32.totalorder %s33, %s36
      %p42 = scmp.eq.s32.totalorder %s23, 0
      %p43 = por %p41, %p42
      %p44 = scmp.ne.s32.totalorder %s33, %s36
      %p45 = scmp.eq.s32.totalorder %s28, 1
      %p46 = por %p44, %p45
      %p47 = scmp.ne.s32.totalorder %s36, %s37
      %p48 = scmp.eq.s32.totalorder %s28, 0
      %p49 = por %p47, %p48
      %p50 = scmp.ne.s32.totalorder %s36, %s37
      %p51 = scmp.eq.s32.totalorder %s29, 1
      %p52 = por %p50, %p51
      %p54 = scmp.ne.s32.totalorder %s37, %s53
      %p55 = scmp.eq.s32.totalorder %s29, 0
      %p56 = por %p54, %p55
      %s57 = ssub.s32 %s23, %s30
      %p58 = scmp.eq.s32.totalorder %s57, 0
      %s60 = sadd.s32 %s59, 1
      %s61 = scalar_select %p58, %s59, %s60
      %p64 = pneg %p58
      %p65 = scmp.eq.s32.totalorder %s23, 1
      %p66 = por %p64, %p65
      %p67 = scmp.ne.s32.totalorder %s59, %s62
      %p68 = scmp.eq.s32.totalorder %s23, 0
      %p69 = por %p67, %p68
      %p70 = scmp.ne.s32.totalorder %s59, %s62
      %p71 = scmp.eq.s32.totalorder %s28, 1
      %p72 = por %p70, %p71
      %p73 = scmp.ne.s32.totalorder %s62, %s63
      %p74 = scmp.eq.s32.totalorder %s28, 0
      %p75 = por %p73, %p74
      %p76 = scmp.ne.s32.totalorder %s62, %s63
      %p77 = scmp.eq.s32.totalorder %s29, 1
      %p78 = por %p76, %p77
      %p80 = scmp.ne.s32.totalorder %s63, %s79
      %p81 = scmp.eq.s32.totalorder %s29, 0
      %p82 = por %p80, %p81
      %s84 = sadd.s32 %s83, 1
      %p87 = scmp.eq.s32.totalorder %s23, 1
      %p88 = scmp.ne.s32.totalorder %s83, %s85
      %p89 = scmp.eq.s32.totalorder %s23, 0
      %p90 = por %p88, %p89
      %p91 = scmp.ne.s32.totalorder %s83, %s85
      %p92 = scmp.eq.s32.totalorder %s28, 1
      %p93 = por %p91, %p92
      %p94 = scmp.ne.s32.totalorder %s85, %s86
      %p95 = scmp.eq.s32.totalorder %s28, 0
      %p96 = por %p94, %p95
      %p97 = scmp.ne.s32.totalorder %s85, %s86
      %p98 = scmp.eq.s32.totalorder %s29, 1
      %p99 = por %p97, %p98
      %p101 = scmp.ne.s32.totalorder %s86, %s100
      %p102 = scmp.eq.s32.totalorder %s29, 0
      %p103 = por %p101, %p102
      %s105 = sadd.s32 %s104, 1
      %p108 = scmp.eq.s32.totalorder %s23, 1
      %p109 = scmp.ne.s32.totalorder %s104, %s106
      %p110 = scmp.eq.s32.totalorder %s23, 0
      %p111 = por %p109, %p110
      %p112 = scmp.ne.s32.totalorder %s104, %s106
      %p113 = scmp.eq.s32.totalorder %s28, 1
      %p114 = por %p112, %p113
      %p115 = scmp.ne.s32.totalorder %s106, %s107
      %p116 = scmp.eq.s32.totalorder %s28, 0
      %p117 = por %p115, %p116
      %p118 = scmp.ne.s32.totalorder %s106, %s107
      %p119 = scmp.eq.s32.totalorder %s29, 1
      %p120 = por %p118, %p119
      %p122 = scmp.ne.s32.totalorder %s107, %s121
      %p123 = scmp.eq.s32.totalorder %s29, 0
      %p124 = por %p122, %p123
      %s126 = sadd.s32 %s125, 1
      %p129 = scmp.eq.s32.totalorder %s23, 1
      %p130 = scmp.ne.s32.totalorder %s125, %s127
      %p131 = scmp.eq.s32.totalorder %s23, 0
      %p132 = por %p130, %p131
      %p133 = scmp.ne.s32.totalorder %s125, %s127
      %p134 = scmp.eq.s32.totalorder %s28, 1
      %p135 = por %p133, %p134
      %p136 = scmp.ne.s32.totalorder %s127, %s128
      %p137 = scmp.eq.s32.totalorder %s28, 0
      %p138 = por %p136, %p137
      %p139 = scmp.ne.s32.totalorder %s127, %s128
      %p140 = scmp.eq.s32.totalorder %s29, 1
      %p141 = por %p139, %p140
      %p143 = scmp.ne.s32.totalorder %s128, %s142
      %p144 = scmp.eq.s32.totalorder %s29, 0
      %p145 = por %p143, %p144
      %s147 = sadd.s32 %s146, 1
      %p150 = scmp.eq.s32.totalorder %s23, 1
      %p151 = scmp.ne.s32.totalorder %s146, %s148
      %p152 = scmp.eq.s32.totalorder %s23, 0
      %p153 = por %p151, %p152
      %p154 = scmp.ne.s32.totalorder %s146, %s148
      %p155 = scmp.eq.s32.totalorder %s28, 1
      %p156 = por %p154, %p155
      %p157 = scmp.ne.s32.totalorder %s148, %s149
      %p158 = scmp.eq.s32.totalorder %s28, 0
      %p159 = por %p157, %p158
      %p160 = scmp.ne.s32.totalorder %s148, %s149
      %p161 = scmp.eq.s32.totalorder %s29, 1
      %p162 = por %p160, %p161
      %p164 = scmp.ne.s32.totalorder %s149, %s163
      %p165 = scmp.eq.s32.totalorder %s29, 0
      %p166 = por %p164, %p165
      %s168 = sadd.s32 %s167, 1
      %p171 = scmp.eq.s32.totalorder %s23, 1
      %p172 = scmp.ne.s32.totalorder %s167, %s169
      %p173 = scmp.eq.s32.totalorder %s23, 0
      %p174 = por %p172, %p173
      %p175 = scmp.ne.s32.totalorder %s167, %s169
      %p176 = scmp.eq.s32.totalorder %s28, 1
      %p177 = por %p175, %p176
      %p178 = scmp.ne.s32.totalorder %s169, %s170
      %p179 = scmp.eq.s32.totalorder %s28, 0
      %p180 = por %p178, %p179
      %p181 = scmp.ne.s32.totalorder %s169, %s170
      %p182 = scmp.eq.s32.totalorder %s29, 1
      %p183 = por %p181, %p182
      %p185 = scmp.ne.s32.totalorder %s170, %s184
      %p186 = scmp.eq.s32.totalorder %s29, 0
      %p187 = por %p185, %p186
      %s189 = sadd.s32 %s188, 1
      %p192 = scmp.eq.s32.totalorder %s23, 1
      %p193 = scmp.ne.s32.totalorder %s188, %s190
      %p194 = scmp.eq.s32.totalorder %s23, 0
      %p195 = por %p193, %p194
      %p196 = scmp.ne.s32.totalorder %s188, %s190
      %p197 = scmp.eq.s32.totalorder %s28, 1
      %p198 = por %p196, %p197
      %p199 = scmp.ne.s32.totalorder %s190, %s191
      %p200 = scmp.eq.s32.totalorder %s28, 0
      %p201 = por %p199, %p200
      %p202 = scmp.ne.s32.totalorder %s190, %s191
      %p203 = scmp.eq.s32.totalorder %s29, 1
      %p204 = por %p202, %p203
      %p206 = scmp.ne.s32.totalorder %s191, %s205
      %p207 = scmp.eq.s32.totalorder %s29, 0
      %p208 = por %p206, %p207
      %s210 = sadd.s32 %s209, 1
      %p213 = scmp.eq.s32.totalorder %s23, 1
      %p214 = scmp.ne.s32.totalorder %s209, %s211
      %p215 = scmp.eq.s32.totalorder %s23, 0
      %p216 = por %p214, %p215
      %p217 = scmp.ne.s32.totalorder %s209, %s211
      %p218 = scmp.eq.s32.totalorder %s28, 1
      %p219 = por %p217, %p218
      %p220 = scmp.ne.s32.totalorder %s211, %s212
      %p221 = scmp.eq.s32.totalorder %s28, 0
      %p222 = por %p220, %p221
      %p223 = scmp.ne.s32.totalorder %s211, %s212
      %p224 = scmp.eq.s32.totalorder %s29, 1
      %p225 = por %p223, %p224
      %p227 = scmp.ne.s32.totalorder %s212, %s226
      %p228 = scmp.eq.s32.totalorder %s29, 0
      %p229 = por %p227, %p228
      %s231 = sadd.s32 %s230, 1
      %p234 = scmp.eq.s32.totalorder %s23, 1
      %p235 = scmp.ne.s32.totalorder %s230, %s232
      %p236 = scmp.eq.s32.totalorder %s23, 0
      %p237 = por %p235, %p236
      %p238 = scmp.ne.s32.totalorder %s230, %s232
      %p239 = scmp.eq.s32.totalorder %s28, 1
      %p240 = por %p238, %p239
      %p241 = scmp.ne.s32.totalorder %s232, %s233
      %p242 = scmp.eq.s32.totalorder %s28, 0
      %p243 = por %p241, %p242
      %p244 = scmp.ne.s32.totalorder %s232, %s233
      %p245 = scmp.eq.s32.totalorder %s29, 1
      %p246 = por %p244, %p245
      %p248 = scmp.ne.s32.totalorder %s233, %s247
      %p249 = scmp.eq.s32.totalorder %s29, 0
      %p250 = por %p248, %p249
      %s252 = sadd.s32 %s251, 1
      %p255 = scmp.eq.s32.totalorder %s23, 1
      %p256 = scmp.ne.s32.totalorder %s251, %s253
      %p257 = scmp.eq.s32.totalorder %s23, 0
      %p258 = por %p256, %p257
      %p259 = scmp.ne.s32.totalorder %s251, %s253
      %p260 = scmp.eq.s32.totalorder %s28, 1
      %p261 = por %p259, %p260
      %p262 = scmp.ne.s32.totalorder %s253, %s254
      %p263 = scmp.eq.s32.totalorder %s28, 0
      %p264 = por %p262, %p263
      %p265 = scmp.ne.s32.totalorder %s253, %s254
      %p266 = scmp.eq.s32.totalorder %s29, 1
      %p267 = por %p265, %p266
      %p269 = scmp.ne.s32.totalorder %s254, %s268
      %p270 = scmp.eq.s32.totalorder %s29, 0
      %p271 = por %p269, %p270
      %s273 = sadd.s32 %s272, 1
      %p276 = scmp.eq.s32.totalorder %s23, 1
      %p277 = scmp.ne.s32.totalorder %s272, %s274
      %p278 = scmp.eq.s32.totalorder %s23, 0
      %p279 = por %p277, %p278
      %p280 = scmp.ne.s32.totalorder %s272, %s274
      %p281 = scmp.eq.s32.totalorder %s28, 1
      %p282 = por %p280, %p281
      %p283 = scmp.ne.s32.totalorder %s274, %s275
      %p284 = scmp.eq.s32.totalorder %s28, 0
      %p285 = por %p283, %p284
      %p286 = scmp.ne.s32.totalorder %s274, %s275
      %p287 = scmp.eq.s32.totalorder %s29, 1
      %p288 = por %p286, %p287
      %p290 = scmp.ne.s32.totalorder %s275, %s289
      %p291 = scmp.eq.s32.totalorder %s29, 0
      %p292 = por %p290, %p291
      %s294 = sadd.s32 %s293, 1
      %p297 = scmp.eq.s32.totalorder %s23, 1
      %p298 = scmp.ne.s32.totalorder %s293, %s295
      %p299 = scmp.eq.s32.totalorder %s23, 0
      %p300 = por %p298, %p299
      %p301 = scmp.ne.s32.totalorder %s293, %s295
      %p302 = scmp.eq.s32.totalorder %s28, 1
      %p303 = por %p301, %p302
      %p304 = scmp.ne.s32.totalorder %s295, %s296
      %p305 = scmp.eq.s32.totalorder %s28, 0
      %p306 = por %p304, %p305
      %p307 = scmp.ne.s32.totalorder %s295, %s296
      %p308 = scmp.eq.s32.totalorder %s29, 1
      %p309 = por %p307, %p308
      %p311 = scmp.ne.s32.totalorder %s296, %s310
      %p312 = scmp.eq.s32.totalorder %s29, 0
      %p313 = por %p311, %p312
      %s315 = sadd.s32 %s314, 1
      %p318 = scmp.eq.s32.totalorder %s23, 1
      %p319 = scmp.ne.s32.totalorder %s314, %s316
      %p320 = scmp.eq.s32.totalorder %s23, 0
      %p321 = por %p319, %p320
      %p322 = scmp.ne.s32.totalorder %s314, %s316
      %p323 = scmp.eq.s32.totalorder %s28, 1
      %p324 = por %p322, %p323
      %p325 = scmp.ne.s32.totalorder %s316, %s317
      %p326 = scmp.eq.s32.totalorder %s28, 0
      %p327 = por %p325, %p326
      %p328 = scmp.ne.s32.totalorder %s316, %s317
      %p329 = scmp.eq.s32.totalorder %s29, 1
      %p330 = por %p328, %p329
      %p332 = scmp.ne.s32.totalorder %s317, %s331
      %p333 = scmp.eq.s32.totalorder %s29, 0
      %p334 = por %p332, %p333
      %s335 = ssub.s32 %s23, %s30
      %p336 = scmp.eq.s32.totalorder %s335, 0
      %s338 = sadd.s32 %s337, 1
      %s339 = scalar_select %p336, %s337, %s338
      %p342 = pneg %p336
      %p343 = scmp.eq.s32.totalorder %s23, 1
      %p344 = por %p342, %p343
      %p345 = scmp.ne.s32.totalorder %s337, %s340
      %p346 = scmp.eq.s32.totalorder %s23, 0
      %p347 = por %p345, %p346
      %p348 = scmp.ne.s32.totalorder %s337, %s340
      %p349 = scmp.eq.s32.totalorder %s28, 1
      %p350 = por %p348, %p349
      %p351 = scmp.ne.s32.totalorder %s340, %s341
      %p352 = scmp.eq.s32.totalorder %s28, 0
      %p353 = por %p351, %p352
      %p354 = scmp.ne.s32.totalorder %s340, %s341
      %p355 = scmp.eq.s32.totalorder %s29, 1
      %p356 = por %p354, %p355
      %p358 = scmp.ne.s32.totalorder %s341, %s357
      %p359 = scmp.eq.s32.totalorder %s29, 0
      %p360 = por %p358, %p359
      %p361 = scmp.le.s32.totalorder 1, %s23
      %p362 = scmp.lt.s32.totalorder %s23, 3
      %p363 = pnand %p361, %p362
      %p364 = pneg %p363
      // Predicated region
      $region9: #{lbanp_encoder_layer.1} parent=5 // pred_check
        _
      $region10: #{lbanp_encoder_layer.1} parent=5 // pred_check_branch
        %366 = sbr.rel (%p363) target = $region12
      $region11: #{lbanp_encoder_layer.1} parent=5 // pred_region
        %s367 = ssub.s32 %s23, 1
        // Predicated region
        $region13: #{lbanp_encoder_layer.1} parent=11 // pred_check
          %p368 = pneg %p96
        $region14: #{lbanp_encoder_layer.1} parent=11 // pred_check_branch
          %370 = sbr.rel (%p368) target = $region16
        $region15: #{lbanp_encoder_layer.1} parent=11 // pred_region
          _
        $region16: #{lbanp_encoder_layer.1} parent=11 // pred_fallthru
          _
        // Predicated region
        $region17: #{lbanp_encoder_layer.1} parent=11 // pred_check
          %p371 = pneg %p117
        $region18: #{lbanp_encoder_layer.1} parent=11 // pred_check_branch
          %373 = sbr.rel (%p371) target = $region20
        $region19: #{lbanp_encoder_layer.1} parent=11 // pred_region
          _
        $region20: #{lbanp_encoder_layer.1} parent=11 // pred_fallthru
          _
        // Predicated region
        $region21: #{lbanp_encoder_layer.1} parent=11 // pred_check
          %p374 = pneg %p138
        $region22: #{lbanp_encoder_layer.1} parent=11 // pred_check_branch
          %376 = sbr.rel (%p374) target = $region24
        $region23: #{lbanp_encoder_layer.1} parent=11 // pred_region
          _
        $region24: #{lbanp_encoder_layer.1} parent=11 // pred_fallthru
          _
        // Predicated region
        $region25: #{lbanp_encoder_layer.1} parent=11 // pred_check
          %p377 = pneg %p159
        $region26: #{lbanp_encoder_layer.1} parent=11 // pred_check_branch
          %379 = sbr.rel (%p377) target = $region28
        $region27: #{lbanp_encoder_layer.1} parent=11 // pred_region
          _
        $region28: #{lbanp_encoder_layer.1} parent=11 // pred_fallthru
          _
        // Predicated region
        $region29: #{lbanp_encoder_layer.1} parent=11 // pred_check
          %p380 = pneg %p180
        $region30: #{lbanp_encoder_layer.1} parent=11 // pred_check_branch
          %382 = sbr.rel (%p380) target = $region32
        $region31: #{lbanp_encoder_layer.1} parent=11 // pred_region
          _
        $region32: #{lbanp_encoder_layer.1} parent=11 // pred_fallthru
          _
        // Predicated region
        $region33: #{lbanp_encoder_layer.1} parent=11 // pred_check
          %p383 = pneg %p201
        $region34: #{lbanp_encoder_layer.1} parent=11 // pred_check_branch
          %385 = sbr.rel (%p383) target = $region36
        $region35: #{lbanp_encoder_layer.1} parent=11 // pred_region
          _
        $region36: #{lbanp_encoder_layer.1} parent=11 // pred_fallthru
          _
        // Predicated region
        $region37: #{lbanp_encoder_layer.1} parent=11 // pred_check
          %p386 = pneg %p222
        $region38: #{lbanp_encoder_layer.1} parent=11 // pred_check_branch
          %388 = sbr.rel (%p386) target = $region40
        $region39: #{lbanp_encoder_layer.1} parent=11 // pred_region
          _
        $region40: #{lbanp_encoder_layer.1} parent=11 // pred_fallthru
          _
        // Predicated region
        $region41: #{lbanp_encoder_layer.1} parent=11 // pred_check
          %p389 = pneg %p243
        $region42: #{lbanp_encoder_layer.1} parent=11 // pred_check_branch
          %391 = sbr.rel (%p389) target = $region44
        $region43: #{lbanp_encoder_layer.1} parent=11 // pred_region
          _
        $region44: #{lbanp_encoder_layer.1} parent=11 // pred_fallthru
          _
        // Predicated region
        $region45: #{lbanp_encoder_layer.1} parent=11 // pred_check
          %p392 = pneg %p264
        $region46: #{lbanp_encoder_layer.1} parent=11 // pred_check_branch
          %394 = sbr.rel (%p392) target = $region48
        $region47: #{lbanp_encoder_layer.1} parent=11 // pred_region
          _
        $region48: #{lbanp_encoder_layer.1} parent=11 // pred_fallthru
          _
        // Predicated region
        $region49: #{lbanp_encoder_layer.1} parent=11 // pred_check
          %p395 = pneg %p285
        $region50: #{lbanp_encoder_layer.1} parent=11 // pred_check_branch
          %397 = sbr.rel (%p395) target = $region52
        $region51: #{lbanp_encoder_layer.1} parent=11 // pred_region
          _
        $region52: #{lbanp_encoder_layer.1} parent=11 // pred_fallthru
          _
        // Predicated region
        $region53: #{lbanp_encoder_layer.1} parent=11 // pred_check
          %p398 = pneg %p306
        $region54: #{lbanp_encoder_layer.1} parent=11 // pred_check_branch
          %400 = sbr.rel (%p398) target = $region56
        $region55: #{lbanp_encoder_layer.1} parent=11 // pred_region
          _
        $region56: #{lbanp_encoder_layer.1} parent=11 // pred_fallthru
          _
        // Predicated region
        $region57: #{lbanp_encoder_layer.1} parent=11 // pred_check
          %p401 = pneg %p327
        $region58: #{lbanp_encoder_layer.1} parent=11 // pred_check_branch
          %403 = sbr.rel (%p401) target = $region60
        $region59: #{lbanp_encoder_layer.1} parent=11 // pred_region
          _
        $region60: #{lbanp_encoder_layer.1} parent=11 // pred_fallthru
          _
      $region12: #{lbanp_encoder_layer.1} parent=5 // pred_fallthru
        _
      %p404 = scmp.lt.s32.totalorder %s23, 2
      // Predicated region
      $region61: #{lbanp_encoder_layer.1} parent=5 // pred_check
        %p405 = pneg %p404
      $region62: #{lbanp_encoder_layer.1} parent=5 // pred_check_branch
        %407 = sbr.rel (%p405) target = $region64
      $region63: #{lbanp_encoder_layer.1} parent=5 // pred_region
        // Predicated region
        $region65: #{lbanp_encoder_layer.1} parent=63 // pred_check
          %p408 = pneg %p43
        $region66: #{lbanp_encoder_layer.1} parent=63 // pred_check_branch
          %410 = sbr.rel (%p408) target = $region68
        $region67: #{lbanp_encoder_layer.1} parent=63 // pred_region
          %p411 = scmp.lt.s32.totalorder %s23, 1
          %s412 = scalar_select %p411, %s23, 1
          %s413 = smul.addr %s412, 8
          %s414 = scalar_lea.vmem %s0, %s413
        $region68: #{lbanp_encoder_layer.1} parent=63 // pred_fallthru
          _
        // Predicated region
        $region69: #{lbanp_encoder_layer.1} parent=63 // pred_check
          %p415 = pneg %p69
        $region70: #{lbanp_encoder_layer.1} parent=63 // pred_check_branch
          %417 = sbr.rel (%p415) target = $region72
        $region71: #{lbanp_encoder_layer.1} parent=63 // pred_region
          %s418 = smul.u32 2, %s23
          %p419 = scmp.lt.s32.totalorder %s418, 3
          %s420 = scalar_select %p419, %s418, 3
          %s421 = smul.addr %s420, 8
          %s422 = scalar_lea.vmem %s1, %s421
          %s423 = smul.u32 2, %s23
        $region72: #{lbanp_encoder_layer.1} parent=63 // pred_fallthru
          _
      $region64: #{lbanp_encoder_layer.1} parent=5 // pred_fallthru
        _
      %p424 = scmp.le.s32.totalorder 1, %s23
      %p425 = scmp.lt.s32.totalorder %s23, 3
      %p426 = pnand %p424, %p425
      %p427 = pneg %p426
      // Predicated region
      $region73: #{lbanp_encoder_layer.1} parent=5 // pred_check
        _
      $region74: #{lbanp_encoder_layer.1} parent=5 // pred_check_branch
        %429 = sbr.rel (%p426) target = $region76
      $region75: #{lbanp_encoder_layer.1} parent=5 // pred_region
        %s430 = ssub.s32 %s23, 1
        %p431 = scmp.lt.s32.totalorder %s28, 1
        %s432 = scalar_select %p431, %s28, 1
        %s433 = smul.addr %s432, 8
        %s434 = scalar_lea.vmem %s0, %s433
        %p435 = pneg %p49
        %p436 = pneg %p46
        %s437 = smul.u32 2, %s28
        %p438 = scmp.lt.s32.totalorder %s437, 3
        %s439 = scalar_select %p438, %s437, 3
        %s440 = smul.addr %s439, 8
        %s441 = scalar_lea.vmem %s1, %s440
        %p442 = pneg %p75
        %p443 = pneg %p72
        %p444 = pneg %p96
        %p445 = pneg %p93
        %p446 = pneg %p117
        %p447 = pneg %p114
        %p448 = pneg %p138
        %p449 = pneg %p135
        %p450 = pneg %p159
        %p451 = pneg %p156
        %p452 = pneg %p180
        %p453 = pneg %p177
        %p454 = pneg %p201
        %p455 = pneg %p198
        %p456 = pneg %p222
        %p457 = pneg %p219
        %p458 = pneg %p243
        %p459 = pneg %p240
        %p460 = pneg %p264
        %p461 = pneg %p261
        %p462 = pneg %p285
        %p463 = pneg %p282
        %p464 = pneg %p306
        %p465 = pneg %p303
        %p466 = pneg %p327
        %p467 = pneg %p324
        %p468 = pneg %p353
        %p469 = pneg %p350
        %s470 = sand.u32 %s340, 1
        %s471 = scalar_lea.sflag [#allocation4], %s470
        %s472 = sand.u32 %s340, 1
        %s473 = smul.addr %s472, 8
        %s474 = scalar_lea.vmem [#allocation3], %s473
        %p475 = scmp.lt.s32.totalorder %s28, 1
        %s476 = scalar_select %p475, %s28, 1
        %s477 = smul.addr %s476, 8
        %s478 = scalar_lea.vmem %s0, %s477
        %s479 = smul.u32 2, %s28
        %p480 = scmp.lt.s32.totalorder %s479, 3
        %s481 = scalar_select %p480, %s479, 3
        %s482 = smul.addr %s481, 8
        %s483 = scalar_lea.vmem %s1, %s482
        %s484 = smul.u32 2, %s28
        %v486 = vld [vmem:[%s2] sm:$0xff]
        %v487 = vld [vmem:[%s2 + $0x8] sm:$0x3f]
        %v488 = vld [vmem:[%s3] sm:$0xf]
        %v489 = vld [vmem:[%s478] sm:$0xff]
        %490 = vadd.xlane.f32.xlu0 %v489
        %v491 = vpop.xlane.xlu0 %490
        %v492 = vrcp.pop 128.0
        %v493 = vmul.f32 128.0, %v492
        %v494 = vsub.f32 1.0, %v493
        %v495 = vmul.f32 %v492, %v494
        %v496 = vadd.f32 %v492, %v495
        %vm497 = vweird.f32 %v492
        %v498 = vsel %vm497, %v492, %v496
        %v499 = vmul.f32 %v491, %v498
        %v500 = vsub.f32 %v489, %v499
        %v501 = vmul.f32 %v500, %v500
        %502 = vadd.xlane.f32.xlu0 %v501
        %v503 = vpop.xlane.xlu0 %502
        %v504 = vmul.f32 %v503, %v498
        %v505 = vadd.f32 %v504, 1e-05
        %v506 = vrsqrt.pop %v505
        %v507 = vmul.f32 %v506, %v505
        %v508 = vmul.f32 %v507, %v506
        %v509 = vmul.f32 0.5, %v508
        %v510 = vsub.f32 1.5, %v509
        %v511 = vmul.f32 %v506, %v510
        %vm512 = vweird.f32 %v505
        %vm513 = vweird.f32 %v506
        %vm514 = vmor %vm512, %vm513
        %v515 = vsel %vm514, %v506, %v511
        %v516 = vmul.f32 %v500, %v515
        %v517 = vperm.slane %v486, 0
        %v518 = vmul.f32 %v516, %v517
        %v519 = vperm.slane %v486, 1
        %v520 = vadd.f32 %v518, %v519
        %v521 = vld [vmem:[%s483] sm:$0xff]
        %v522 = vld [vmem:[%s483 + $0x8] sm:$0xff]
        %523 = vadd.xlane.f32.xlu0 %v521
        %v524 = vpop.xlane.xlu0 %523
        %525 = vadd.xlane.f32.xlu0 %v522
        %v526 = vpop.xlane.xlu0 %525
        %v527 = vmul.f32 %v524, %v498
        %v528 = vmul.f32 %v526, %v498
        %v529 = vsub.f32 %v521, %v527
        %v530 = vsub.f32 %v522, %v528
        %v531 = vmul.f32 %v529, %v529
        %v532 = vmul.f32 %v530, %v530
        %533 = vadd.xlane.f32.xlu0 %v531
        %v534 = vpop.xlane.xlu0 %533
        %535 = vadd.xlane.f32.xlu0 %v532
        %v536 = vpop.xlane.xlu0 %535
        %v537 = vmul.f32 %v534, %v498
        %v538 = vmul.f32 %v536, %v498
        %v539 = vadd.f32 %v537, 1e-05
        %v540 = vadd.f32 %v538, 1e-05
        %v541 = vrsqrt.pop %v539
        %v542 = vmul.f32 %v541, %v539
        %v543 = vmul.f32 %v542, %v541
        %v544 = vmul.f32 0.5, %v543
        %v545 = vsub.f32 1.5, %v544
        %v546 = vmul.f32 %v541, %v545
        %vm547 = vweird.f32 %v539
        %vm548 = vweird.f32 %v541
        %vm549 = vmor %vm547, %vm548
        %v550 = vsel %vm549, %v541, %v546
        %v551 = vrsqrt.pop %v540
        %v552 = vmul.f32 %v551, %v540
        %v553 = vmul.f32 %v552, %v551
        %v554 = vmul.f32 0.5, %v553
        %v555 = vsub.f32 1.5, %v554
        %v556 = vmul.f32 %v551, %v555
        %vm557 = vweird.f32 %v540
        %vm558 = vweird.f32 %v551
        %vm559 = vmor %vm557, %vm558
        %v560 = vsel %vm559, %v551, %v556
        %v561 = vmul.f32 %v529, %v550
        %v562 = vmul.f32 %v530, %v560
        %v563 = vperm.slane %v486, 2
        %v564 = vmul.f32 %v561, %v563
        %v565 = vmul.f32 %v562, %v563
        %v566 = vperm.slane %v486, 3
        %v567 = vadd.f32 %v564, %v566
        %v568 = vadd.f32 %v565, %v566
        %v569 = vpack.c.bf16 %v520, %v520
        %v570 = vld [vmem:[%s4] sm:$0xf]
        %v571 = vld [vmem:[%s4 + $0x4] sm:$0xf]
        %v572 = vld [vmem:[%s4 + $0x8] sm:$0xf]
        %v573 = vld [vmem:[%s4 + $0xc] sm:$0xf]
        %v574 = vld [vmem:[%s4 + $0x10] sm:$0xf]
        %v575 = vld [vmem:[%s4 + $0x14] sm:$0xf]
        %v576 = vld [vmem:[%s4 + $0x18] sm:$0xf]
        %v577 = vld [vmem:[%s4 + $0x1c] sm:$0xf]
        %v578 = vld [vmem:[%s4 + $0x20] sm:$0xf]
        %v579 = vld [vmem:[%s4 + $0x24] sm:$0xf]
        %v580 = vld [vmem:[%s4 + $0x28] sm:$0xf]
        %v581 = vld [vmem:[%s4 + $0x2c] sm:$0xf]
        %v582 = vld [vmem:[%s4 + $0x30] sm:$0xf]
        %v583 = vld [vmem:[%s4 + $0x34] sm:$0xf]
        %v584 = vld [vmem:[%s4 + $0x38] sm:$0xf]
        %v585 = vld [vmem:[%s4 + $0x3c] sm:$0xf]
        %v602 = vunpack.c.l.b16 %v570
        %v603 = vunpack.c.l.b16 %v571
        %v604 = vunpack.c.l.b16 %v572
        %v605 = vunpack.c.l.b16 %v573
        %v606 = vunpack.c.l.b16 %v574
        %v607 = vunpack.c.l.b16 %v575
        %v608 = vunpack.c.l.b16 %v576
        %v609 = vunpack.c.l.b16 %v577
        %v610 = vunpack.c.l.b16 %v578
        %v611 = vunpack.c.l.b16 %v579
        %v612 = vunpack.c.l.b16 %v580
        %v613 = vunpack.c.l.b16 %v581
        %v614 = vunpack.c.l.b16 %v582
        %v615 = vunpack.c.l.b16 %v583
        %v616 = vunpack.c.l.b16 %v584
        %v617 = vunpack.c.l.b16 %v585
        %v618 = vpack.c.b16 %v603, %v602
        %v619 = vpack.c.b16 %v605, %v604
        %v620 = vpack.c.b16 %v607, %v606
        %v621 = vpack.c.b16 %v609, %v608
        %v622 = vpack.c.b16 %v611, %v610
        %v623 = vpack.c.b16 %v613, %v612
        %v624 = vpack.c.b16 %v615, %v614
        %v625 = vpack.c.b16 %v617, %v616
        %634 = vmatpush.bf16.msra.mxu0 %v625
        %635 = vmatpush.bf16.msra.mxu0 %v624
        %636 = vmatpush.bf16.msra.mxu0 %v623
        %637 = vmatpush.bf16.msra.mxu0 %v622
        %638 = vmatpush.bf16.msra.mxu0 %v621
        %639 = vmatpush.bf16.msra.mxu0 %v620
        %640 = vmatpush.bf16.msra.mxu0 %v619
        %641 = vmatpush.bf16.msra.mxu0 %v618
        %642 = vmatmul.bf16.gmra.mxu0 %v569
        %v643 = vpop.f32.mrf.mxu0
        %v644 = vadd.f32 0.0, %v643
        %v645 = vpop.f32.mrf.mxu0
        %646 = vdwg.mxu0
        %v647 = vmul.f32 %v644, 0.17677669
        %v648 = vpack.c.bf16 %v568, %v567
        %v649 = vld [vmem:[%s5] sm:$0xff]
        %v650 = vld [vmem:[%s5 + $0x8] sm:$0xff]
        %v651 = vld [vmem:[%s5 + $0x10] sm:$0xff]
        %v652 = vld [vmem:[%s5 + $0x18] sm:$0xff]
        %v653 = vld [vmem:[%s5 + $0x20] sm:$0xff]
        %v654 = vld [vmem:[%s5 + $0x28] sm:$0xff]
        %v655 = vld [vmem:[%s5 + $0x30] sm:$0xff]
        %v656 = vld [vmem:[%s5 + $0x38] sm:$0xff]
        %v657 = vld [vmem:[%s5 + $0x40] sm:$0xff]
        %v658 = vld [vmem:[%s5 + $0x48] sm:$0xff]
        %v659 = vld [vmem:[%s5 + $0x50] sm:$0xff]
        %v660 = vld [vmem:[%s5 + $0x58] sm:$0xff]
        %v661 = vld [vmem:[%s5 + $0x60] sm:$0xff]
        %v662 = vld [vmem:[%s5 + $0x68] sm:$0xff]
        %v663 = vld [vmem:[%s5 + $0x70] sm:$0xff]
        %v664 = vld [vmem:[%s5 + $0x78] sm:$0xff]
        %v681 = vunpack.c.l.b16 %v649
        %v682 = vunpack.c.h.b16 %v649
        %v683 = vunpack.c.l.b16 %v650
        %v684 = vunpack.c.h.b16 %v650
        %v685 = vunpack.c.l.b16 %v651
        %v686 = vunpack.c.h.b16 %v651
        %v687 = vunpack.c.l.b16 %v652
        %v688 = vunpack.c.h.b16 %v652
        %v689 = vunpack.c.l.b16 %v653
        %v690 = vunpack.c.h.b16 %v653
        %v691 = vunpack.c.l.b16 %v654
        %v692 = vunpack.c.h.b16 %v654
        %v693 = vunpack.c.l.b16 %v655
        %v694 = vunpack.c.h.b16 %v655
        %v695 = vunpack.c.l.b16 %v656
        %v696 = vunpack.c.h.b16 %v656
        %v697 = vunpack.c.l.b16 %v657
        %v698 = vunpack.c.h.b16 %v657
        %v699 = vunpack.c.l.b16 %v658
        %v700 = vunpack.c.h.b16 %v658
        %v701 = vunpack.c.l.b16 %v659
        %v702 = vunpack.c.h.b16 %v659
        %v703 = vunpack.c.l.b16 %v660
        %v704 = vunpack.c.h.b16 %v660
        %v705 = vunpack.c.l.b16 %v661
        %v706 = vunpack.c.h.b16 %v661
        %v707 = vunpack.c.l.b16 %v662
        %v708 = vunpack.c.h.b16 %v662
        %v709 = vunpack.c.l.b16 %v663
        %v710 = vunpack.c.h.b16 %v663
        %v711 = vunpack.c.l.b16 %v664
        %v712 = vunpack.c.h.b16 %v664
        %v713 = vpack.c.b16 %v683, %v681
        %v714 = vpack.c.b16 %v684, %v682
        %v715 = vpack.c.b16 %v687, %v685
        %v716 = vpack.c.b16 %v688, %v686
        %v717 = vpack.c.b16 %v691, %v689
        %v718 = vpack.c.b16 %v692, %v690
        %v719 = vpack.c.b16 %v695, %v693
        %v720 = vpack.c.b16 %v696, %v694
        %v721 = vpack.c.b16 %v699, %v697
        %v722 = vpack.c.b16 %v700, %v698
        %v723 = vpack.c.b16 %v703, %v701
        %v724 = vpack.c.b16 %v704, %v702
        %v725 = vpack.c.b16 %v707, %v705
        %v726 = vpack.c.b16 %v708, %v706
        %v727 = vpack.c.b16 %v711, %v709
        %v728 = vpack.c.b16 %v712, %v710
        %745 = vmatpush.bf16.msra.mxu0 %v727
        %746 = vmatpush.bf16.msra.mxu0 %v725
        %747 = vmatpush.bf16.msra.mxu0 %v723
        %748 = vmatpush.bf16.msra.mxu0 %v721
        %749 = vmatpush.bf16.msra.mxu0 %v719
        %750 = vmatpush.bf16.msra.mxu0 %v717
        %751 = vmatpush.bf16.msra.mxu0 %v715
        %752 = vmatpush.bf16.msra.mxu0 %v713
        %753 = vmatmul.bf16.gmra.mxu0 %v648
        %v754 = vpop.f32.mrf.mxu0
        %v755 = vadd.f32 0.0, %v754
        %v756 = vpop.f32.mrf.mxu0
        %v757 = vadd.f32 0.0, %v756
        %758 = vdwg.mxu0
        %759 = vmatpush.bf16.msra.mxu0 %v728
        %760 = vmatpush.bf16.msra.mxu0 %v726
        %761 = vmatpush.bf16.msra.mxu0 %v724
        %762 = vmatpush.bf16.msra.mxu0 %v722
        %763 = vmatpush.bf16.msra.mxu0 %v720
        %764 = vmatpush.bf16.msra.mxu0 %v718
        %765 = vmatpush.bf16.msra.mxu0 %v716
        %766 = vmatpush.bf16.msra.mxu0 %v714
        %767 = vmatmul.bf16.gmra.mxu0 %v648
        %v768 = vpop.f32.mrf.mxu0
        %v769 = vadd.f32 0.0, %v768
        %v770 = vpop.f32.mrf.mxu0
        %v771 = vadd.f32 0.0, %v770
        %772 = vdwg.mxu0
        %v773 = vpack.c.bf16 %v647, %v647
        %v774 = vpack.c.bf16 %v755, %v755
        %v775 = vpack.c.bf16 %v757, %v757
        %v778 = vunpack.c.l.b16 %v774
        %v779 = vunpack.c.l.b16 %v775
        %v780 = vpack.c.b16 %v779, %v778
        %vm781 = vcmask 261120
        %v783 = vsel %vm781, %v773, 0
        %v786 = vsel %vm781, %v780, 0
        %788 = vmatpush.bf16.xpose.msra.mxu0 0
        %789 = vmatpush.bf16.xpose.msra.mxu0 0
        %790 = vmatpush.bf16.xpose.msra.mxu0 0
        %791 = vmatpush.bf16.xpose.msra.mxu0 0
        %792 = vmatpush.bf16.xpose.msra.mxu0 0
        %793 = vmatpush.bf16.xpose.msra.mxu0 0
        %794 = vmatpush.bf16.xpose.msra.mxu0 0
        %795 = vmatpush.bf16.xpose.msra.mxu0 %v786
        %796 = vmatmul.bf16.gmra.mxu0 %v783
        %v797 = vpop.f32.mrf.mxu0
        %v798 = vadd.f32 0.0, %v797
        %v799 = vpop.f32.mrf.mxu0
        %800 = vdwg.mxu0
        %vm801 = vcmask 130048
        %v802 = vsel %vm801, %v798, -inf
        %803 = vmax.xlane.f32.xlu0 %v802
        %v804 = vpop.xlane.xlu0 %803
        %v805 = vsub.f32 %v798, %v804
        %v806 = vmul.f32 %v805, 1.442695
        %v807 = vpow.pop %v806
        %v808 = vsel %vm801, %v807, 0.0
        %809 = vadd.xlane.f32.xlu0 %v808
        %v810 = vpop.xlane.xlu0 %809
        %v811 = vrcp.pop %v810
        %v812 = vmul.f32 %v807, %v811
        %v813 = vpack.c.bf16 %v812, %v812
        %v814 = vpack.c.bf16 %v769, %v769
        %v815 = vpack.c.bf16 %v771, %v771
        %v818 = vunpack.c.l.b16 %v814
        %v819 = vunpack.c.l.b16 %v815
        %v820 = vpack.c.b16 %v819, %v818
        %v823 = vsel %vm801, %v813, 0
        %825 = vmatpush.bf16.msra.mxu0 0
        %826 = vmatpush.bf16.msra.mxu0 0
        %827 = vmatpush.bf16.msra.mxu0 0
        %828 = vmatpush.bf16.msra.mxu0 0
        %829 = vmatpush.bf16.msra.mxu0 0
        %830 = vmatpush.bf16.msra.mxu0 0
        %831 = vmatpush.bf16.msra.mxu0 0
        %832 = vmatpush.bf16.msra.mxu0 %v820
        %833 = vmatmul.bf16.gmra.mxu0 %v823
        %v834 = vpop.f32.mrf.mxu0
        %v835 = vadd.f32 0.0, %v834
        %v836 = vpop.f32.mrf.mxu0
        %837 = vdwg.mxu0
        %838 = vst.msk [vmem:[#allocation2] sm:$0xff] %vm781, %v835
        %v840 = vunpack.c.l.b16 %v773
        %v841 = vpack.c.b16 %v840, %v840
        %842 = vrot.lane.b32.xlu0 %v841, 96
        %v843 = vpop.permute.xlu0 %842
        %844 = vrot.lane.b32.xlu0 %v780, 96
        %v845 = vpop.permute.xlu0 %844
        %v847 = vsel %vm781, %v843, 0
        %v850 = vsel %vm781, %v845, 0
        %852 = vmatpush.bf16.xpose.msra.mxu0 0
        %853 = vmatpush.bf16.xpose.msra.mxu0 0
        %854 = vmatpush.bf16.xpose.msra.mxu0 0
        %855 = vmatpush.bf16.xpose.msra.mxu0 0
        %856 = vmatpush.bf16.xpose.msra.mxu0 0
        %857 = vmatpush.bf16.xpose.msra.mxu0 0
        %858 = vmatpush.bf16.xpose.msra.mxu0 0
        %859 = vmatpush.bf16.xpose.msra.mxu0 %v850
        %860 = vmatmul.bf16.gmra.mxu0 %v847
        %v861 = vpop.f32.mrf.mxu0
        %v862 = vadd.f32 0.0, %v861
        %v863 = vpop.f32.mrf.mxu0
        %864 = vdwg.mxu0
        %v865 = vsel %vm801, %v862, -inf
        %866 = vmax.xlane.f32.xlu0 %v865
        %v867 = vpop.xlane.xlu0 %866
        %v868 = vsub.f32 %v862, %v867
        %v869 = vmul.f32 %v868, 1.442695
        %v870 = vpow.pop %v869
        %v871 = vsel %vm801, %v870, 0.0
        %872 = vadd.xlane.f32.xlu0 %v871
        %v873 = vpop.xlane.xlu0 %872
        %v874 = vrcp.pop %v873
        %v875 = vmul.f32 %v870, %v874
        %v876 = vpack.c.bf16 %v875, %v875
        %877 = vrot.lane.b32.xlu0 %v820, 96
        %v878 = vpop.permute.xlu0 %877
        %v881 = vsel %vm801, %v876, 0
        %883 = vmatpush.bf16.msra.mxu0 0
        %884 = vmatpush.bf16.msra.mxu0 0
        %885 = vmatpush.bf16.msra.mxu0 0
        %886 = vmatpush.bf16.msra.mxu0 0
        %887 = vmatpush.bf16.msra.mxu0 0
        %888 = vmatpush.bf16.msra.mxu0 0
        %889 = vmatpush.bf16.msra.mxu0 0
        %890 = vmatpush.bf16.msra.mxu0 %v878
        %891 = vmatmul.bf16.gmra.mxu0 %v881
        %v892 = vpop.f32.mrf.mxu0
        %v893 = vadd.f32 0.0, %v892
        %v894 = vpop.f32.mrf.mxu0
        %895 = vdwg.mxu0
        %897 = vrot.lane.b32.xlu0 %v893, 32
        %v898 = vpop.permute.xlu0 %897
        %vm900 = vcmask 523520
        %901 = vst.msk [vmem:[#allocation2] sm:$0xff] %vm900, %v898
        %902 = vrot.lane.b32.xlu0 %v841, 64
        %v903 = vpop.permute.xlu0 %902
        %904 = vrot.lane.b32.xlu0 %v780, 64
        %v905 = vpop.permute.xlu0 %904
        %v907 = vsel %vm781, %v903, 0
        %v910 = vsel %vm781, %v905, 0
        %912 = vmatpush.bf16.xpose.msra.mxu0 0
        %913 = vmatpush.bf16.xpose.msra.mxu0 0
        %914 = vmatpush.bf16.xpose.msra.mxu0 0
        %915 = vmatpush.bf16.xpose.msra.mxu0 0
        %916 = vmatpush.bf16.xpose.msra.mxu0 0
        %917 = vmatpush.bf16.xpose.msra.mxu0 0
        %918 = vmatpush.bf16.xpose.msra.mxu0 0
        %919 = vmatpush.bf16.xpose.msra.mxu0 %v910
        %920 = vmatmul.bf16.gmra.mxu0 %v907
        %v921 = vpop.f32.mrf.mxu0
        %v922 = vadd.f32 0.0, %v921
        %v923 = vpop.f32.mrf.mxu0
        %924 = vdwg.mxu0
        %v925 = vsel %vm801, %v922, -inf
        %926 = vmax.xlane.f32.xlu0 %v925
        %v927 = vpop.xlane.xlu0 %926
        %v928 = vsub.f32 %v922, %v927
        %v929 = vmul.f32 %v928, 1.442695
        %v930 = vpow.pop %v929
        %v931 = vsel %vm801, %v930, 0.0
        %932 = vadd.xlane.f32.xlu0 %v931
        %v933 = vpop.xlane.xlu0 %932
        %v934 = vrcp.pop %v933
        %v935 = vmul.f32 %v930, %v934
        %v936 = vpack.c.bf16 %v935, %v935
        %937 = vrot.lane.b32.xlu0 %v820, 64
        %v938 = vpop.permute.xlu0 %937
        %v941 = vsel %vm801, %v936, 0
        %943 = vmatpush.bf16.msra.mxu0 0
        %944 = vmatpush.bf16.msra.mxu0 0
        %945 = vmatpush.bf16.msra.mxu0 0
        %946 = vmatpush.bf16.msra.mxu0 0
        %947 = vmatpush.bf16.msra.mxu0 0
        %948 = vmatpush.bf16.msra.mxu0 0
        %949 = vmatpush.bf16.msra.mxu0 0
        %950 = vmatpush.bf16.msra.mxu0 %v938
        %951 = vmatmul.bf16.gmra.mxu0 %v941
        %v952 = vpop.f32.mrf.mxu0
        %v953 = vadd.f32 0.0, %v952
        %v954 = vpop.f32.mrf.mxu0
        %955 = vdwg.mxu0
        %957 = vrot.lane.b32.xlu0 %v953, 64
        %v958 = vpop.permute.xlu0 %957
        %vm960 = vcmask 785920
        %961 = vst.msk [vmem:[#allocation2] sm:$0xff] %vm960, %v958
        %962 = vrot.lane.b32.xlu0 %v841, 32
        %v963 = vpop.permute.xlu0 %962
        %964 = vrot.lane.b32.xlu0 %v780, 32
        %v965 = vpop.permute.xlu0 %964
        %v967 = vsel %vm781, %v963, 0
        %v970 = vsel %vm781, %v965, 0
        %972 = vmatpush.bf16.xpose.msra.mxu0 0
        %973 = vmatpush.bf16.xpose.msra.mxu0 0
        %974 = vmatpush.bf16.xpose.msra.mxu0 0
        %975 = vmatpush.bf16.xpose.msra.mxu0 0
        %976 = vmatpush.bf16.xpose.msra.mxu0 0
        %977 = vmatpush.bf16.xpose.msra.mxu0 0
        %978 = vmatpush.bf16.xpose.msra.mxu0 0
        %979 = vmatpush.bf16.xpose.msra.mxu0 %v970
        %980 = vmatmul.bf16.gmra.mxu0 %v967
        %v981 = vpop.f32.mrf.mxu0
        %v982 = vadd.f32 0.0, %v981
        %v983 = vpop.f32.mrf.mxu0
        %984 = vdwg.mxu0
        %v985 = vsel %vm801, %v982, -inf
        %986 = vmax.xlane.f32.xlu0 %v985
        %v987 = vpop.xlane.xlu0 %986
        %v988 = vsub.f32 %v982, %v987
        %v989 = vmul.f32 %v988, 1.442695
        %v990 = vpow.pop %v989
        %v991 = vsel %vm801, %v990, 0.0
        %992 = vadd.xlane.f32.xlu0 %v991
        %v993 = vpop.xlane.xlu0 %992
        %v994 = vrcp.pop %v993
        %v995 = vmul.f32 %v990, %v994
        %v996 = vpack.c.bf16 %v995, %v995
        %997 = vrot.lane.b32.xlu0 %v820, 32
        %v998 = vpop.permute.xlu0 %997
        %v1001 = vsel %vm801, %v996, 0
        %1003 = vmatpush.bf16.msra.mxu0 0
        %1004 = vmatpush.bf16.msra.mxu0 0
        %1005 = vmatpush.bf16.msra.mxu0 0
        %1006 = vmatpush.bf16.msra.mxu0 0
        %1007 = vmatpush.bf16.msra.mxu0 0
        %1008 = vmatpush.bf16.msra.mxu0 0
        %1009 = vmatpush.bf16.msra.mxu0 0
        %1010 = vmatpush.bf16.msra.mxu0 %v998
        %1011 = vmatmul.bf16.gmra.mxu0 %v1001
        %v1012 = vpop.f32.mrf.mxu0
        %v1013 = vadd.f32 0.0, %v1012
        %v1014 = vpop.f32.mrf.mxu0
        %1015 = vdwg.mxu0
        %1017 = vrot.lane.b32.xlu0 %v1013, 96
        %v1018 = vpop.permute.xlu0 %1017
        %vm1020 = vcmask 1048320
        %1021 = vst.msk [vmem:[#allocation2] sm:$0xff] %vm1020, %v1018
        %v1022 = vld [vmem:[#allocation2] sm:$0xff]
        %v1023 = vpack.c.bf16 %v1022, %v1022
        %v1024 = vld [vmem:[%s6] sm:$0xf]
        %v1025 = vld [vmem:[%s6 + $0x4] sm:$0xf]
        %v1026 = vld [vmem:[%s6 + $0x8] sm:$0xf]
        %v1027 = vld [vmem:[%s6 + $0xc] sm:$0xf]
        %v1028 = vld [vmem:[%s6 + $0x10] sm:$0xf]
        %v1029 = vld [vmem:[%s6 + $0x14] sm:$0xf]
        %v1030 = vld [vmem:[%s6 + $0x18] sm:$0xf]
        %v1031 = vld [vmem:[%s6 + $0x1c] sm:$0xf]
        %v1032 = vld [vmem:[%s6 + $0x20] sm:$0xf]
        %v1033 = vld [vmem:[%s6 + $0x24] sm:$0xf]
        %v1034 = vld [vmem:[%s6 + $0x28] sm:$0xf]
        %v1035 = vld [vmem:[%s6 + $0x2c] sm:$0xf]
        %v1036 = vld [vmem:[%s6 + $0x30] sm:$0xf]
        %v1037 = vld [vmem:[%s6 + $0x34] sm:$0xf]
        %v1038 = vld [vmem:[%s6 + $0x38] sm:$0xf]
        %v1039 = vld [vmem:[%s6 + $0x3c] sm:$0xf]
        %v1040 = vperm.slane %v486, 4
        %v1057 = vunpack.c.l.b16 %v1024
        %v1058 = vunpack.c.l.b16 %v1025
        %v1059 = vunpack.c.l.b16 %v1026
        %v1060 = vunpack.c.l.b16 %v1027
        %v1061 = vunpack.c.l.b16 %v1028
        %v1062 = vunpack.c.l.b16 %v1029
        %v1063 = vunpack.c.l.b16 %v1030
        %v1064 = vunpack.c.l.b16 %v1031
        %v1065 = vunpack.c.l.b16 %v1032
        %v1066 = vunpack.c.l.b16 %v1033
        %v1067 = vunpack.c.l.b16 %v1034
        %v1068 = vunpack.c.l.b16 %v1035
        %v1069 = vunpack.c.l.b16 %v1036
        %v1070 = vunpack.c.l.b16 %v1037
        %v1071 = vunpack.c.l.b16 %v1038
        %v1072 = vunpack.c.l.b16 %v1039
        %v1073 = vpack.c.b16 %v1058, %v1057
        %v1074 = vpack.c.b16 %v1060, %v1059
        %v1075 = vpack.c.b16 %v1062, %v1061
        %v1076 = vpack.c.b16 %v1064, %v1063
        %v1077 = vpack.c.b16 %v1066, %v1065
        %v1078 = vpack.c.b16 %v1068, %v1067
        %v1079 = vpack.c.b16 %v1070, %v1069
        %v1080 = vpack.c.b16 %v1072, %v1071
        %1089 = vmatpush.bf16.msra.mxu0 %v1080
        %1090 = vmatpush.bf16.msra.mxu0 %v1079
        %1091 = vmatpush.bf16.msra.mxu0 %v1078
        %1092 = vmatpush.bf16.msra.mxu0 %v1077
        %1093 = vmatpush.bf16.msra.mxu0 %v1076
        %1094 = vmatpush.bf16.msra.mxu0 %v1075
        %1095 = vmatpush.bf16.msra.mxu0 %v1074
        %1096 = vmatpush.bf16.msra.mxu0 %v1073
        %1097 = vmatmul.bf16.gmra.mxu0 %v1023
        %v1098 = vpop.f32.mrf.mxu0
        %v1099 = vadd.f32 %v1040, %v1098
        %v1100 = vpop.f32.mrf.mxu0
        %1101 = vdwg.mxu0
        %v1102 = vadd.f32 %v489, %v1099
        %1103 = vadd.xlane.f32.xlu0 %v1102
        %v1104 = vpop.xlane.xlu0 %1103
        %v1105 = vmul.f32 %v1104, %v498
        %v1106 = vsub.f32 %v1102, %v1105
        %v1107 = vmul.f32 %v1106, %v1106
        %1108 = vadd.xlane.f32.xlu0 %v1107
        %v1109 = vpop.xlane.xlu0 %1108
        %v1110 = vmul.f32 %v1109, %v498
        %v1111 = vadd.f32 %v1110, 1e-05
        %v1112 = vrsqrt.pop %v1111
        %v1113 = vmul.f32 %v1112, %v1111
        %v1114 = vmul.f32 %v1113, %v1112
        %v1115 = vmul.f32 0.5, %v1114
        %v1116 = vsub.f32 1.5, %v1115
        %v1117 = vmul.f32 %v1112, %v1116
        %vm1118 = vweird.f32 %v1111
        %vm1119 = vweird.f32 %v1112
        %vm1120 = vmor %vm1118, %vm1119
        %v1121 = vsel %vm1120, %v1112, %v1117
        %v1122 = vmul.f32 %v1106, %v1121
        %v1123 = vperm.slane %v486, 5
        %v1124 = vmul.f32 %v1122, %v1123
        %v1125 = vperm.slane %v486, 6
        %v1126 = vadd.f32 %v1124, %v1125
        %v1127 = vpack.c.bf16 %v1126, %v1126
        %v1128 = vld [vmem:[%s7] sm:$0xff]
        %v1129 = vld [vmem:[%s7 + $0x8] sm:$0xff]
        %v1130 = vld [vmem:[%s7 + $0x10] sm:$0xff]
        %v1131 = vld [vmem:[%s7 + $0x18] sm:$0xff]
        %v1132 = vld [vmem:[%s7 + $0x20] sm:$0xff]
        %v1133 = vld [vmem:[%s7 + $0x28] sm:$0xff]
        %v1134 = vld [vmem:[%s7 + $0x30] sm:$0xff]
        %v1135 = vld [vmem:[%s7 + $0x38] sm:$0xff]
        %v1136 = vld [vmem:[%s7 + $0x40] sm:$0xff]
        %v1137 = vld [vmem:[%s7 + $0x48] sm:$0xff]
        %v1138 = vld [vmem:[%s7 + $0x50] sm:$0xff]
        %v1139 = vld [vmem:[%s7 + $0x58] sm:$0xff]
        %v1140 = vld [vmem:[%s7 + $0x60] sm:$0xff]
        %v1141 = vld [vmem:[%s7 + $0x68] sm:$0xff]
        %v1142 = vld [vmem:[%s7 + $0x70] sm:$0xff]
        %v1143 = vld [vmem:[%s7 + $0x78] sm:$0xff]
        %v1145 = vperm.slane %v488, 0
        %v1146 = vperm.slane %v488, 2
        %v1149 = vperm.slane %v1145, 0
        %v1150 = vperm.slane %v1146, 0
        %v1167 = vunpack.c.l.b16 %v1128
        %v1168 = vunpack.c.h.b16 %v1128
        %v1169 = vunpack.c.l.b16 %v1129
        %v1170 = vunpack.c.h.b16 %v1129
        %v1171 = vunpack.c.l.b16 %v1130
        %v1172 = vunpack.c.h.b16 %v1130
        %v1173 = vunpack.c.l.b16 %v1131
        %v1174 = vunpack.c.h.b16 %v1131
        %v1175 = vunpack.c.l.b16 %v1132
        %v1176 = vunpack.c.h.b16 %v1132
        %v1177 = vunpack.c.l.b16 %v1133
        %v1178 = vunpack.c.h.b16 %v1133
        %v1179 = vunpack.c.l.b16 %v1134
        %v1180 = vunpack.c.h.b16 %v1134
        %v1181 = vunpack.c.l.b16 %v1135
        %v1182 = vunpack.c.h.b16 %v1135
        %v1183 = vunpack.c.l.b16 %v1136
        %v1184 = vunpack.c.h.b16 %v1136
        %v1185 = vunpack.c.l.b16 %v1137
        %v1186 = vunpack.c.h.b16 %v1137
        %v1187 = vunpack.c.l.b16 %v1138
        %v1188 = vunpack.c.h.b16 %v1138
        %v1189 = vunpack.c.l.b16 %v1139
        %v1190 = vunpack.c.h.b16 %v1139
        %v1191 = vunpack.c.l.b16 %v1140
        %v1192 = vunpack.c.h.b16 %v1140
        %v1193 = vunpack.c.l.b16 %v1141
        %v1194 = vunpack.c.h.b16 %v1141
        %v1195 = vunpack.c.l.b16 %v1142
        %v1196 = vunpack.c.h.b16 %v1142
        %v1197 = vunpack.c.l.b16 %v1143
        %v1198 = vunpack.c.h.b16 %v1143
        %v1199 = vpack.c.b16 %v1169, %v1167
        %v1200 = vpack.c.b16 %v1170, %v1168
        %v1201 = vpack.c.b16 %v1173, %v1171
        %v1202 = vpack.c.b16 %v1174, %v1172
        %v1203 = vpack.c.b16 %v1177, %v1175
        %v1204 = vpack.c.b16 %v1178, %v1176
        %v1205 = vpack.c.b16 %v1181, %v1179
        %v1206 = vpack.c.b16 %v1182, %v1180
        %v1207 = vpack.c.b16 %v1185, %v1183
        %v1208 = vpack.c.b16 %v1186, %v1184
        %v1209 = vpack.c.b16 %v1189, %v1187
        %v1210 = vpack.c.b16 %v1190, %v1188
        %v1211 = vpack.c.b16 %v1193, %v1191
        %v1212 = vpack.c.b16 %v1194, %v1192
        %v1213 = vpack.c.b16 %v1197, %v1195
        %v1214 = vpack.c.b16 %v1198, %v1196
        %1231 = vmatpush.bf16.msra.mxu0 %v1213
        %1232 = vmatpush.bf16.msra.mxu0 %v1211
        %1233 = vmatpush.bf16.msra.mxu0 %v1209
        %1234 = vmatpush.bf16.msra.mxu0 %v1207
        %1235 = vmatpush.bf16.msra.mxu0 %v1205
        %1236 = vmatpush.bf16.msra.mxu0 %v1203
        %1237 = vmatpush.bf16.msra.mxu0 %v1201
        %1238 = vmatpush.bf16.msra.mxu0 %v1199
        %1239 = vmatmul.bf16.gmra.mxu0 %v1127
        %v1240 = vpop.f32.mrf.mxu0
        %v1241 = vadd.f32 %v1149, %v1240
        %v1242 = vpop.f32.mrf.mxu0
        %1243 = vdwg.mxu0
        %1244 = vmatpush.bf16.msra.mxu0 %v1214
        %1245 = vmatpush.bf16.msra.mxu0 %v1212
        %1246 = vmatpush.bf16.msra.mxu0 %v1210
        %1247 = vmatpush.bf16.msra.mxu0 %v1208
        %1248 = vmatpush.bf16.msra.mxu0 %v1206
        %1249 = vmatpush.bf16.msra.mxu0 %v1204
        %1250 = vmatpush.bf16.msra.mxu0 %v1202
        %1251 = vmatpush.bf16.msra.mxu0 %v1200
        %1252 = vmatmul.bf16.gmra.mxu0 %v1127
        %v1253 = vpop.f32.mrf.mxu0
        %v1254 = vadd.f32 %v1150, %v1253
        %v1255 = vpop.f32.mrf.mxu0
        %1256 = vdwg.mxu0
        %v1257 = vmul.f32 %v1254, %v1254
        %v1258 = vmul.f32 %v1254, %v1257
        %v1259 = vmul.f32 %v1258, 0.044715
        %v1260 = vadd.f32 %v1254, %v1259
        %v1261 = vmul.f32 %v1260, 0.7978846
        %v1262 = vtanh.pop %v1261
        %v1263 = vadd.f32 %v1262, 1.0
        %v1264 = vmul.f32 %v1263, 0.5
        %v1265 = vmul.f32 %v1254, %v1264
        %v1266 = vmul.f32 %v1241, %v1265
        %v1267 = vpack.c.bf16 %v1266, %v1266
        %v1268 = vld [vmem:[%s8] sm:$0xf]
        %v1269 = vld [vmem:[%s8 + $0x4] sm:$0xf]
        %v1270 = vld [vmem:[%s8 + $0x8] sm:$0xf]
        %v1271 = vld [vmem:[%s8 + $0xc] sm:$0xf]
        %v1272 = vld [vmem:[%s8 + $0x10] sm:$0xf]
        %v1273 = vld [vmem:[%s8 + $0x14] sm:$0xf]
        %v1274 = vld [vmem:[%s8 + $0x18] sm:$0xf]
        %v1275 = vld [vmem:[%s8 + $0x1c] sm:$0xf]
        %v1276 = vld [vmem:[%s8 + $0x20] sm:$0xf]
        %v1277 = vld [vmem:[%s8 + $0x24] sm:$0xf]
        %v1278 = vld [vmem:[%s8 + $0x28] sm:$0xf]
        %v1279 = vld [vmem:[%s8 + $0x2c] sm:$0xf]
        %v1280 = vld [vmem:[%s8 + $0x30] sm:$0xf]
        %v1281 = vld [vmem:[%s8 + $0x34] sm:$0xf]
        %v1282 = vld [vmem:[%s8 + $0x38] sm:$0xf]
        %v1283 = vld [vmem:[%s8 + $0x3c] sm:$0xf]
        %v1284 = vperm.slane %v486, 7
        %v1301 = vunpack.c.l.b16 %v1268
        %v1302 = vunpack.c.l.b16 %v1269
        %v1303 = vunpack.c.l.b16 %v1270
        %v1304 = vunpack.c.l.b16 %v1271
        %v1305 = vunpack.c.l.b16 %v1272
        %v1306 = vunpack.c.l.b16 %v1273
        %v1307 = vunpack.c.l.b16 %v1274
        %v1308 = vunpack.c.l.b16 %v1275
        %v1309 = vunpack.c.l.b16 %v1276
        %v1310 = vunpack.c.l.b16 %v1277
        %v1311 = vunpack.c.l.b16 %v1278
        %v1312 = vunpack.c.l.b16 %v1279
        %v1313 = vunpack.c.l.b16 %v1280
        %v1314 = vunpack.c.l.b16 %v1281
        %v1315 = vunpack.c.l.b16 %v1282
        %v1316 = vunpack.c.l.b16 %v1283
        %v1317 = vpack.c.b16 %v1302, %v1301
        %v1318 = vpack.c.b16 %v1304, %v1303
        %v1319 = vpack.c.b16 %v1306, %v1305
        %v1320 = vpack.c.b16 %v1308, %v1307
        %v1321 = vpack.c.b16 %v1310, %v1309
        %v1322 = vpack.c.b16 %v1312, %v1311
        %v1323 = vpack.c.b16 %v1314, %v1313
        %v1324 = vpack.c.b16 %v1316, %v1315
        %1333 = vmatpush.bf16.msra.mxu0 %v1324
        %1334 = vmatpush.bf16.msra.mxu0 %v1323
        %1335 = vmatpush.bf16.msra.mxu0 %v1322
        %1336 = vmatpush.bf16.msra.mxu0 %v1321
        %1337 = vmatpush.bf16.msra.mxu0 %v1320
        %1338 = vmatpush.bf16.msra.mxu0 %v1319
        %1339 = vmatpush.bf16.msra.mxu0 %v1318
        %1340 = vmatpush.bf16.msra.mxu0 %v1317
        %1341 = vmatmul.bf16.gmra.mxu0 %v1267
        %v1342 = vpop.f32.mrf.mxu0
        %v1343 = vadd.f32 %v1284, %v1342
        %v1344 = vpop.f32.mrf.mxu0
        %1345 = vdwg.mxu0
        %v1346 = vadd.f32 %v1102, %v1343
        %1347 = vadd.xlane.f32.xlu0 %v1346
        %v1348 = vpop.xlane.xlu0 %1347
        %v1349 = vmul.f32 %v1348, %v498
        %v1350 = vsub.f32 %v1346, %v1349
        %v1351 = vmul.f32 %v1350, %v1350
        %1352 = vadd.xlane.f32.xlu0 %v1351
        %v1353 = vpop.xlane.xlu0 %1352
        %v1354 = vmul.f32 %v1353, %v498
        %v1355 = vadd.f32 %v1354, 1e-05
        %v1356 = vrsqrt.pop %v1355
        %v1357 = vmul.f32 %v1356, %v1355
        %v1358 = vmul.f32 %v1357, %v1356
        %v1359 = vmul.f32 0.5, %v1358
        %v1360 = vsub.f32 1.5, %v1359
        %v1361 = vmul.f32 %v1356, %v1360
        %vm1362 = vweird.f32 %v1355
        %vm1363 = vweird.f32 %v1356
        %vm1364 = vmor %vm1362, %vm1363
        %v1365 = vsel %vm1364, %v1356, %v1361
        %v1366 = vmul.f32 %v1350, %v1365
        %v1367 = vperm.slane %v487, 0
        %v1368 = vmul.f32 %v1366, %v1367
        %v1369 = vperm.slane %v487, 1
        %v1370 = vadd.f32 %v1368, %v1369
        %v1371 = vpack.c.bf16 %v1370, %v1370
        %v1372 = vld [vmem:[%s9] sm:$0xf]
        %v1373 = vld [vmem:[%s9 + $0x4] sm:$0xf]
        %v1374 = vld [vmem:[%s9 + $0x8] sm:$0xf]
        %v1375 = vld [vmem:[%s9 + $0xc] sm:$0xf]
        %v1376 = vld [vmem:[%s9 + $0x10] sm:$0xf]
        %v1377 = vld [vmem:[%s9 + $0x14] sm:$0xf]
        %v1378 = vld [vmem:[%s9 + $0x18] sm:$0xf]
        %v1379 = vld [vmem:[%s9 + $0x1c] sm:$0xf]
        %v1380 = vld [vmem:[%s9 + $0x20] sm:$0xf]
        %v1381 = vld [vmem:[%s9 + $0x24] sm:$0xf]
        %v1382 = vld [vmem:[%s9 + $0x28] sm:$0xf]
        %v1383 = vld [vmem:[%s9 + $0x2c] sm:$0xf]
        %v1384 = vld [vmem:[%s9 + $0x30] sm:$0xf]
        %v1385 = vld [vmem:[%s9 + $0x34] sm:$0xf]
        %v1386 = vld [vmem:[%s9 + $0x38] sm:$0xf]
        %v1387 = vld [vmem:[%s9 + $0x3c] sm:$0xf]
        %v1404 = vunpack.c.l.b16 %v1372
        %v1405 = vunpack.c.l.b16 %v1373
        %v1406 = vunpack.c.l.b16 %v1374
        %v1407 = vunpack.c.l.b16 %v1375
        %v1408 = vunpack.c.l.b16 %v1376
        %v1409 = vunpack.c.l.b16 %v1377
        %v1410 = vunpack.c.l.b16 %v1378
        %v1411 = vunpack.c.l.b16 %v1379
        %v1412 = vunpack.c.l.b16 %v1380
        %v1413 = vunpack.c.l.b16 %v1381
        %v1414 = vunpack.c.l.b16 %v1382
        %v1415 = vunpack.c.l.b16 %v1383
        %v1416 = vunpack.c.l.b16 %v1384
        %v1417 = vunpack.c.l.b16 %v1385
        %v1418 = vunpack.c.l.b16 %v1386
        %v1419 = vunpack.c.l.b16 %v1387
        %v1420 = vpack.c.b16 %v1405, %v1404
        %v1421 = vpack.c.b16 %v1407, %v1406
        %v1422 = vpack.c.b16 %v1409, %v1408
        %v1423 = vpack.c.b16 %v1411, %v1410
        %v1424 = vpack.c.b16 %v1413, %v1412
        %v1425 = vpack.c.b16 %v1415, %v1414
        %v1426 = vpack.c.b16 %v1417, %v1416
        %v1427 = vpack.c.b16 %v1419, %v1418
        %1436 = vmatpush.bf16.msra.mxu0 %v1427
        %1437 = vmatpush.bf16.msra.mxu0 %v1426
        %1438 = vmatpush.bf16.msra.mxu0 %v1425
        %1439 = vmatpush.bf16.msra.mxu0 %v1424
        %1440 = vmatpush.bf16.msra.mxu0 %v1423
        %1441 = vmatpush.bf16.msra.mxu0 %v1422
        %1442 = vmatpush.bf16.msra.mxu0 %v1421
        %1443 = vmatpush.bf16.msra.mxu0 %v1420
        %1444 = vmatmul.bf16.gmra.mxu0 %v1371
        %v1445 = vpop.f32.mrf.mxu0
        %v1446 = vadd.f32 0.0, %v1445
        %v1447 = vpop.f32.mrf.mxu0
        %1448 = vdwg.mxu0
        %v1449 = vmul.f32 %v1446, 0.17677669
        %v1450 = vld [vmem:[%s10] sm:$0xff]
        %v1451 = vld [vmem:[%s10 + $0x8] sm:$0xff]
        %v1452 = vld [vmem:[%s10 + $0x10] sm:$0xff]
        %v1453 = vld [vmem:[%s10 + $0x18] sm:$0xff]
        %v1454 = vld [vmem:[%s10 + $0x20] sm:$0xff]
        %v1455 = vld [vmem:[%s10 + $0x28] sm:$0xff]
        %v1456 = vld [vmem:[%s10 + $0x30] sm:$0xff]
        %v1457 = vld [vmem:[%s10 + $0x38] sm:$0xff]
        %v1458 = vld [vmem:[%s10 + $0x40] sm:$0xff]
        %v1459 = vld [vmem:[%s10 + $0x48] sm:$0xff]
        %v1460 = vld [vmem:[%s10 + $0x50] sm:$0xff]
        %v1461 = vld [vmem:[%s10 + $0x58] sm:$0xff]
        %v1462 = vld [vmem:[%s10 + $0x60] sm:$0xff]
        %v1463 = vld [vmem:[%s10 + $0x68] sm:$0xff]
        %v1464 = vld [vmem:[%s10 + $0x70] sm:$0xff]
        %v1465 = vld [vmem:[%s10 + $0x78] sm:$0xff]
        %v1482 = vunpack.c.l.b16 %v1450
        %v1483 = vunpack.c.h.b16 %v1450
        %v1484 = vunpack.c.l.b16 %v1451
        %v1485 = vunpack.c.h.b16 %v1451
        %v1486 = vunpack.c.l.b16 %v1452
        %v1487 = vunpack.c.h.b16 %v1452
        %v1488 = vunpack.c.l.b16 %v1453
        %v1489 = vunpack.c.h.b16 %v1453
        %v1490 = vunpack.c.l.b16 %v1454
        %v1491 = vunpack.c.h.b16 %v1454
        %v1492 = vunpack.c.l.b16 %v1455
        %v1493 = vunpack.c.h.b16 %v1455
        %v1494 = vunpack.c.l.b16 %v1456
        %v1495 = vunpack.c.h.b16 %v1456
        %v1496 = vunpack.c.l.b16 %v1457
        %v1497 = vunpack.c.h.b16 %v1457
        %v1498 = vunpack.c.l.b16 %v1458
        %v1499 = vunpack.c.h.b16 %v1458
        %v1500 = vunpack.c.l.b16 %v1459
        %v1501 = vunpack.c.h.b16 %v1459
        %v1502 = vunpack.c.l.b16 %v1460
        %v1503 = vunpack.c.h.b16 %v1460
        %v1504 = vunpack.c.l.b16 %v1461
        %v1505 = vunpack.c.h.b16 %v1461
        %v1506 = vunpack.c.l.b16 %v1462
        %v1507 = vunpack.c.h.b16 %v1462
        %v1508 = vunpack.c.l.b16 %v1463
        %v1509 = vunpack.c.h.b16 %v1463
        %v1510 = vunpack.c.l.b16 %v1464
        %v1511 = vunpack.c.h.b16 %v1464
        %v1512 = vunpack.c.l.b16 %v1465
        %v1513 = vunpack.c.h.b16 %v1465
        %v1514 = vpack.c.b16 %v1484, %v1482
        %v1515 = vpack.c.b16 %v1485, %v1483
        %v1516 = vpack.c.b16 %v1488, %v1486
        %v1517 = vpack.c.b16 %v1489, %v1487
        %v1518 = vpack.c.b16 %v1492, %v1490
        %v1519 = vpack.c.b16 %v1493, %v1491
        %v1520 = vpack.c.b16 %v1496, %v1494
        %v1521 = vpack.c.b16 %v1497, %v1495
        %v1522 = vpack.c.b16 %v1500, %v1498
        %v1523 = vpack.c.b16 %v1501, %v1499
        %v1524 = vpack.c.b16 %v1504, %v1502
        %v1525 = vpack.c.b16 %v1505, %v1503
        %v1526 = vpack.c.b16 %v1508, %v1506
        %v1527 = vpack.c.b16 %v1509, %v1507
        %v1528 = vpack.c.b16 %v1512, %v1510
        %v1529 = vpack.c.b16 %v1513, %v1511
        %1546 = vmatpush.bf16.msra.mxu0 %v1528
        %1547 = vmatpush.bf16.msra.mxu0 %v1526
        %1548 = vmatpush.bf16.msra.mxu0 %v1524
        %1549 = vmatpush.bf16.msra.mxu0 %v1522
        %1550 = vmatpush.bf16.msra.mxu0 %v1520
        %1551 = vmatpush.bf16.msra.mxu0 %v1518
        %1552 = vmatpush.bf16.msra.mxu0 %v1516
        %1553 = vmatpush.bf16.msra.mxu0 %v1514
        %1554 = vmatmul.bf16.gmra.mxu0 %v1371
        %v1555 = vpop.f32.mrf.mxu0
        %v1556 = vadd.f32 0.0, %v1555
        %v1557 = vpop.f32.mrf.mxu0
        %1558 = vdwg.mxu0
        %1559 = vmatpush.bf16.msra.mxu0 %v1529
        %1560 = vmatpush.bf16.msra.mxu0 %v1527
        %1561 = vmatpush.bf16.msra.mxu0 %v1525
        %1562 = vmatpush.bf16.msra.mxu0 %v1523
        %1563 = vmatpush.bf16.msra.mxu0 %v1521
        %1564 = vmatpush.bf16.msra.mxu0 %v1519
        %1565 = vmatpush.bf16.msra.mxu0 %v1517
        %1566 = vmatpush.bf16.msra.mxu0 %v1515
        %1567 = vmatmul.bf16.gmra.mxu0 %v1371
        %v1568 = vpop.f32.mrf.mxu0
        %v1569 = vadd.f32 0.0, %v1568
        %v1570 = vpop.f32.mrf.mxu0
        %1571 = vdwg.mxu0
        %v1572 = vpack.c.bf16 %v1449, %v1449
        %v1573 = vpack.c.bf16 %v1556, %v1556
        %v1575 = vsel %vm781, %v1572, 0
        %v1578 = vsel %vm781, %v1573, 0
        %1580 = vmatpush.bf16.xpose.msra.mxu0 0
        %1581 = vmatpush.bf16.xpose.msra.mxu0 0
        %1582 = vmatpush.bf16.xpose.msra.mxu0 0
        %1583 = vmatpush.bf16.xpose.msra.mxu0 0
        %1584 = vmatpush.bf16.xpose.msra.mxu0 0
        %1585 = vmatpush.bf16.xpose.msra.mxu0 0
        %1586 = vmatpush.bf16.xpose.msra.mxu0 0
        %1587 = vmatpush.bf16.xpose.msra.mxu0 %v1578
        %1588 = vmatmul.bf16.gmra.mxu0 %v1575
        %v1589 = vpop.f32.mrf.mxu0
        %v1590 = vadd.f32 0.0, %v1589
        %v1591 = vpop.f32.mrf.mxu0
        %1592 = vdwg.mxu0
        %vm1593 = vcmask 64512
        %v1594 = vsel %vm1593, %v1590, -inf
        %1595 = vmax.xlane.f32.xlu0 %v1594
        %v1596 = vpop.xlane.xlu0 %1595
        %v1597 = vsub.f32 %v1590, %v1596
        %v1598 = vmul.f32 %v1597, 1.442695
        %v1599 = vpow.pop %v1598
        %v1600 = vsel %vm1593, %v1599, 0.0
        %1601 = vadd.xlane.f32.xlu0 %v1600
        %v1602 = vpop.xlane.xlu0 %1601
        %v1603 = vrcp.pop %v1602
        %v1604 = vmul.f32 %v1599, %v1603
        %v1605 = vpack.c.bf16 %v1604, %v1604
        %v1606 = vpack.c.bf16 %v1569, %v1569
        %v1608 = vsel %vm1593, %v1605, 0
        %vm1610 = vcmask 1043456
        %v1612 = vsel %vm1610, %v1606, 0
        %1614 = vmatpush.bf16.msra.mxu0 0
        %1615 = vmatpush.bf16.msra.mxu0 0
        %1616 = vmatpush.bf16.msra.mxu0 0
        %1617 = vmatpush.bf16.msra.mxu0 0
        %1618 = vmatpush.bf16.msra.mxu0 0
        %1619 = vmatpush.bf16.msra.mxu0 0
        %1620 = vmatpush.bf16.msra.mxu0 0
        %1621 = vmatpush.bf16.msra.mxu0 %v1612
        %1622 = vmatmul.bf16.gmra.mxu0 %v1608
        %v1623 = vpop.f32.mrf.mxu0
        %v1624 = vadd.f32 0.0, %v1623
        %v1625 = vpop.f32.mrf.mxu0
        %1626 = vdwg.mxu0
        %1627 = vst.msk [vmem:[#allocation2] sm:$0xff] %vm781, %v1624
        %v1629 = vunpack.c.l.b16 %v1572
        %v1630 = vpack.c.b16 %v1629, %v1629
        %1631 = vrot.lane.b32.xlu0 %v1630, 96
        %v1632 = vpop.permute.xlu0 %1631
        %v1634 = vunpack.c.l.b16 %v1573
        %v1635 = vpack.c.b16 %v1634, %v1634
        %1636 = vrot.lane.b32.xlu0 %v1635, 96
        %v1637 = vpop.permute.xlu0 %1636
        %v1639 = vsel %vm781, %v1632, 0
        %v1642 = vsel %vm781, %v1637, 0
        %1644 = vmatpush.bf16.xpose.msra.mxu0 0
        %1645 = vmatpush.bf16.xpose.msra.mxu0 0
        %1646 = vmatpush.bf16.xpose.msra.mxu0 0
        %1647 = vmatpush.bf16.xpose.msra.mxu0 0
        %1648 = vmatpush.bf16.xpose.msra.mxu0 0
        %1649 = vmatpush.bf16.xpose.msra.mxu0 0
        %1650 = vmatpush.bf16.xpose.msra.mxu0 0
        %1651 = vmatpush.bf16.xpose.msra.mxu0 %v1642
        %1652 = vmatmul.bf16.gmra.mxu0 %v1639
        %v1653 = vpop.f32.mrf.mxu0
        %v1654 = vadd.f32 0.0, %v1653
        %v1655 = vpop.f32.mrf.mxu0
        %1656 = vdwg.mxu0
        %v1657 = vsel %vm1593, %v1654, -inf
        %1658 = vmax.xlane.f32.xlu0 %v1657
        %v1659 = vpop.xlane.xlu0 %1658
        %v1660 = vsub.f32 %v1654, %v1659
        %v1661 = vmul.f32 %v1660, 1.442695
        %v1662 = vpow.pop %v1661
        %v1663 = vsel %vm1593, %v1662, 0.0
        %1664 = vadd.xlane.f32.xlu0 %v1663
        %v1665 = vpop.xlane.xlu0 %1664
        %v1666 = vrcp.pop %v1665
        %v1667 = vmul.f32 %v1662, %v1666
        %v1668 = vpack.c.bf16 %v1667, %v1667
        %v1670 = vunpack.c.l.b16 %v1606
        %v1671 = vpack.c.b16 %v1670, %v1670
        %1672 = vrot.lane.b32.xlu0 %v1671, 96
        %v1673 = vpop.permute.xlu0 %1672
        %v1675 = vsel %vm1593, %v1668, 0
        %v1678 = vsel %vm1610, %v1673, 0
        %1680 = vmatpush.bf16.msra.mxu0 0
        %1681 = vmatpush.bf16.msra.mxu0 0
        %1682 = vmatpush.bf16.msra.mxu0 0
        %1683 = vmatpush.bf16.msra.mxu0 0
        %1684 = vmatpush.bf16.msra.mxu0 0
        %1685 = vmatpush.bf16.msra.mxu0 0
        %1686 = vmatpush.bf16.msra.mxu0 0
        %1687 = vmatpush.bf16.msra.mxu0 %v1678
        %1688 = vmatmul.bf16.gmra.mxu0 %v1675
        %v1689 = vpop.f32.mrf.mxu0
        %v1690 = vadd.f32 0.0, %v1689
        %v1691 = vpop.f32.mrf.mxu0
        %1692 = vdwg.mxu0
        %1694 = vrot.lane.b32.xlu0 %v1690, 32
        %v1695 = vpop.permute.xlu0 %1694
        %1697 = vst.msk [vmem:[#allocation2] sm:$0xff] %vm900, %v1695
        %1698 = vrot.lane.b32.xlu0 %v1630, 64
        %v1699 = vpop.permute.xlu0 %1698
        %1700 = vrot.lane.b32.xlu0 %v1635, 64
        %v1701 = vpop.permute.xlu0 %1700
        %v1703 = vsel %vm781, %v1699, 0
        %v1706 = vsel %vm781, %v1701, 0
        %1708 = vmatpush.bf16.xpose.msra.mxu0 0
        %1709 = vmatpush.bf16.xpose.msra.mxu0 0
        %1710 = vmatpush.bf16.xpose.msra.mxu0 0
        %1711 = vmatpush.bf16.xpose.msra.mxu0 0
        %1712 = vmatpush.bf16.xpose.msra.mxu0 0
        %1713 = vmatpush.bf16.xpose.msra.mxu0 0
        %1714 = vmatpush.bf16.xpose.msra.mxu0 0
        %1715 = vmatpush.bf16.xpose.msra.mxu0 %v1706
        %1716 = vmatmul.bf16.gmra.mxu0 %v1703
        %v1717 = vpop.f32.mrf.mxu0
        %v1718 = vadd.f32 0.0, %v1717
        %v1719 = vpop.f32.mrf.mxu0
        %1720 = vdwg.mxu0
        %v1721 = vsel %vm1593, %v1718, -inf
        %1722 = vmax.xlane.f32.xlu0 %v1721
        %v1723 = vpop.xlane.xlu0 %1722
        %v1724 = vsub.f32 %v1718, %v1723
        %v1725 = vmul.f32 %v1724, 1.442695
        %v1726 = vpow.pop %v1725
        %v1727 = vsel %vm1593, %v1726, 0.0
        %1728 = vadd.xlane.f32.xlu0 %v1727
        %v1729 = vpop.xlane.xlu0 %1728
        %v1730 = vrcp.pop %v1729
        %v1731 = vmul.f32 %v1726, %v1730
        %v1732 = vpack.c.bf16 %v1731, %v1731
        %1733 = vrot.lane.b32.xlu0 %v1671, 64
        %v1734 = vpop.permute.xlu0 %1733
        %v1736 = vsel %vm1593, %v1732, 0
        %v1739 = vsel %vm1610, %v1734, 0
        %1741 = vmatpush.bf16.msra.mxu0 0
        %1742 = vmatpush.bf16.msra.mxu0 0
        %1743 = vmatpush.bf16.msra.mxu0 0
        %1744 = vmatpush.bf16.msra.mxu0 0
        %1745 = vmatpush.bf16.msra.mxu0 0
        %1746 = vmatpush.bf16.msra.mxu0 0
        %1747 = vmatpush.bf16.msra.mxu0 0
        %1748 = vmatpush.bf16.msra.mxu0 %v1739
        %1749 = vmatmul.bf16.gmra.mxu0 %v1736
        %v1750 = vpop.f32.mrf.mxu0
        %v1751 = vadd.f32 0.0, %v1750
        %v1752 = vpop.f32.mrf.mxu0
        %1753 = vdwg.mxu0
        %1755 = vrot.lane.b32.xlu0 %v1751, 64
        %v1756 = vpop.permute.xlu0 %1755
        %1758 = vst.msk [vmem:[#allocation2] sm:$0xff] %vm960, %v1756
        %1759 = vrot.lane.b32.xlu0 %v1630, 32
        %v1760 = vpop.permute.xlu0 %1759
        %1761 = vrot.lane.b32.xlu0 %v1635, 32
        %v1762 = vpop.permute.xlu0 %1761
        %v1764 = vsel %vm781, %v1760, 0
        %v1767 = vsel %vm781, %v1762, 0
        %1769 = vmatpush.bf16.xpose.msra.mxu0 0
        %1770 = vmatpush.bf16.xpose.msra.mxu0 0
        %1771 = vmatpush.bf16.xpose.msra.mxu0 0
        %1772 = vmatpush.bf16.xpose.msra.mxu0 0
        %1773 = vmatpush.bf16.xpose.msra.mxu0 0
        %1774 = vmatpush.bf16.xpose.msra.mxu0 0
        %1775 = vmatpush.bf16.xpose.msra.mxu0 0
        %1776 = vmatpush.bf16.xpose.msra.mxu0 %v1767
        %1777 = vmatmul.bf16.gmra.mxu0 %v1764
        %v1778 = vpop.f32.mrf.mxu0
        %v1779 = vadd.f32 0.0, %v1778
        %v1780 = vpop.f32.mrf.mxu0
        %1781 = vdwg.mxu0
        %v1782 = vsel %vm1593, %v1779, -inf
        %1783 = vmax.xlane.f32.xlu0 %v1782
        %v1784 = vpop.xlane.xlu0 %1783
        %v1785 = vsub.f32 %v1779, %v1784
        %v1786 = vmul.f32 %v1785, 1.442695
        %v1787 = vpow.pop %v1786
        %v1788 = vsel %vm1593, %v1787, 0.0
        %1789 = vadd.xlane.f32.xlu0 %v1788
        %v1790 = vpop.xlane.xlu0 %1789
        %v1791 = vrcp.pop %v1790
        %v1792 = vmul.f32 %v1787, %v1791
        %v1793 = vpack.c.bf16 %v1792, %v1792
        %1794 = vrot.lane.b32.xlu0 %v1671, 32
        %v1795 = vpop.permute.xlu0 %1794
        %v1797 = vsel %vm1593, %v1793, 0
        %v1800 = vsel %vm1610, %v1795, 0
        %1802 = vmatpush.bf16.msra.mxu0 0
        %1803 = vmatpush.bf16.msra.mxu0 0
        %1804 = vmatpush.bf16.msra.mxu0 0
        %1805 = vmatpush.bf16.msra.mxu0 0
        %1806 = vmatpush.bf16.msra.mxu0 0
        %1807 = vmatpush.bf16.msra.mxu0 0
        %1808 = vmatpush.bf16.msra.mxu0 0
        %1809 = vmatpush.bf16.msra.mxu0 %v1800
        %1810 = vmatmul.bf16.gmra.mxu0 %v1797
        %v1811 = vpop.f32.mrf.mxu0
        %v1812 = vadd.f32 0.0, %v1811
        %v1813 = vpop.f32.mrf.mxu0
        %1814 = vdwg.mxu0
        %1816 = vrot.lane.b32.xlu0 %v1812, 96
        %v1817 = vpop.permute.xlu0 %1816
        %1819 = vst.msk [vmem:[#allocation2] sm:$0xff] %vm1020, %v1817
        %v1820 = vld [vmem:[#allocation2] sm:$0xff]
        %v1821 = vpack.c.bf16 %v1820, %v1820
        %v1822 = vld [vmem:[%s11] sm:$0xf]
        %v1823 = vld [vmem:[%s11 + $0x4] sm:$0xf]
        %v1824 = vld [vmem:[%s11 + $0x8] sm:$0xf]
        %v1825 = vld [vmem:[%s11 + $0xc] sm:$0xf]
        %v1826 = vld [vmem:[%s11 + $0x10] sm:$0xf]
        %v1827 = vld [vmem:[%s11 + $0x14] sm:$0xf]
        %v1828 = vld [vmem:[%s11 + $0x18] sm:$0xf]
        %v1829 = vld [vmem:[%s11 + $0x1c] sm:$0xf]
        %v1830 = vld [vmem:[%s11 + $0x20] sm:$0xf]
        %v1831 = vld [vmem:[%s11 + $0x24] sm:$0xf]
        %v1832 = vld [vmem:[%s11 + $0x28] sm:$0xf]
        %v1833 = vld [vmem:[%s11 + $0x2c] sm:$0xf]
        %v1834 = vld [vmem:[%s11 + $0x30] sm:$0xf]
        %v1835 = vld [vmem:[%s11 + $0x34] sm:$0xf]
        %v1836 = vld [vmem:[%s11 + $0x38] sm:$0xf]
        %v1837 = vld [vmem:[%s11 + $0x3c] sm:$0xf]
        %v1838 = vperm.slane %v487, 2
        %v1855 = vunpack.c.l.b16 %v1822
        %v1856 = vunpack.c.l.b16 %v1823
        %v1857 = vunpack.c.l.b16 %v1824
        %v1858 = vunpack.c.l.b16 %v1825
        %v1859 = vunpack.c.l.b16 %v1826
        %v1860 = vunpack.c.l.b16 %v1827
        %v1861 = vunpack.c.l.b16 %v1828
        %v1862 = vunpack.c.l.b16 %v1829
        %v1863 = vunpack.c.l.b16 %v1830
        %v1864 = vunpack.c.l.b16 %v1831
        %v1865 = vunpack.c.l.b16 %v1832
        %v1866 = vunpack.c.l.b16 %v1833
        %v1867 = vunpack.c.l.b16 %v1834
        %v1868 = vunpack.c.l.b16 %v1835
        %v1869 = vunpack.c.l.b16 %v1836
        %v1870 = vunpack.c.l.b16 %v1837
        %v1871 = vpack.c.b16 %v1856, %v1855
        %v1872 = vpack.c.b16 %v1858, %v1857
        %v1873 = vpack.c.b16 %v1860, %v1859
        %v1874 = vpack.c.b16 %v1862, %v1861
        %v1875 = vpack.c.b16 %v1864, %v1863
        %v1876 = vpack.c.b16 %v1866, %v1865
        %v1877 = vpack.c.b16 %v1868, %v1867
        %v1878 = vpack.c.b16 %v1870, %v1869
        %1887 = vmatpush.bf16.msra.mxu0 %v1878
        %1888 = vmatpush.bf16.msra.mxu0 %v1877
        %1889 = vmatpush.bf16.msra.mxu0 %v1876
        %1890 = vmatpush.bf16.msra.mxu0 %v1875
        %1891 = vmatpush.bf16.msra.mxu0 %v1874
        %1892 = vmatpush.bf16.msra.mxu0 %v1873
        %1893 = vmatpush.bf16.msra.mxu0 %v1872
        %1894 = vmatpush.bf16.msra.mxu0 %v1871
        %1895 = vmatmul.bf16.gmra.mxu0 %v1821
        %v1896 = vpop.f32.mrf.mxu0
        %v1897 = vadd.f32 %v1838, %v1896
        %v1898 = vpop.f32.mrf.mxu0
        %1899 = vdwg.mxu0
        %v1900 = vadd.f32 %v1346, %v1897
        %1901 = vadd.xlane.f32.xlu0 %v1900
        %v1902 = vpop.xlane.xlu0 %1901
        %v1903 = vmul.f32 %v1902, %v498
        %v1904 = vsub.f32 %v1900, %v1903
        %v1905 = vmul.f32 %v1904, %v1904
        %1906 = vadd.xlane.f32.xlu0 %v1905
        %v1907 = vpop.xlane.xlu0 %1906
        %v1908 = vmul.f32 %v1907, %v498
        %v1909 = vadd.f32 %v1908, 1e-05
        %v1910 = vrsqrt.pop %v1909
        %v1911 = vmul.f32 %v1910, %v1909
        %v1912 = vmul.f32 %v1911, %v1910
        %v1913 = vmul.f32 0.5, %v1912
        %v1914 = vsub.f32 1.5, %v1913
        %v1915 = vmul.f32 %v1910, %v1914
        %vm1916 = vweird.f32 %v1909
        %vm1917 = vweird.f32 %v1910
        %vm1918 = vmor %vm1916, %vm1917
        %v1919 = vsel %vm1918, %v1910, %v1915
        %v1920 = vmul.f32 %v1904, %v1919
        %v1921 = vperm.slane %v487, 3
        %v1922 = vmul.f32 %v1920, %v1921
        %v1923 = vperm.slane %v487, 4
        %v1924 = vadd.f32 %v1922, %v1923
        %v1925 = vpack.c.bf16 %v1924, %v1924
        %v1926 = vld [vmem:[%s12] sm:$0xff]
        %v1927 = vld [vmem:[%s12 + $0x8] sm:$0xff]
        %v1928 = vld [vmem:[%s12 + $0x10] sm:$0xff]
        %v1929 = vld [vmem:[%s12 + $0x18] sm:$0xff]
        %v1930 = vld [vmem:[%s12 + $0x20] sm:$0xff]
        %v1931 = vld [vmem:[%s12 + $0x28] sm:$0xff]
        %v1932 = vld [vmem:[%s12 + $0x30] sm:$0xff]
        %v1933 = vld [vmem:[%s12 + $0x38] sm:$0xff]
        %v1934 = vld [vmem:[%s12 + $0x40] sm:$0xff]
        %v1935 = vld [vmem:[%s12 + $0x48] sm:$0xff]
        %v1936 = vld [vmem:[%s12 + $0x50] sm:$0xff]
        %v1937 = vld [vmem:[%s12 + $0x58] sm:$0xff]
        %v1938 = vld [vmem:[%s12 + $0x60] sm:$0xff]
        %v1939 = vld [vmem:[%s12 + $0x68] sm:$0xff]
        %v1940 = vld [vmem:[%s12 + $0x70] sm:$0xff]
        %v1941 = vld [vmem:[%s12 + $0x78] sm:$0xff]
        %v1942 = vperm.slane %v488, 1
        %v1943 = vperm.slane %v488, 3
        %v1946 = vperm.slane %v1942, 1
        %v1947 = vperm.slane %v1943, 1
        %v1964 = vunpack.c.l.b16 %v1926
        %v1965 = vunpack.c.h.b16 %v1926
        %v1966 = vunpack.c.l.b16 %v1927
        %v1967 = vunpack.c.h.b16 %v1927
        %v1968 = vunpack.c.l.b16 %v1928
        %v1969 = vunpack.c.h.b16 %v1928
        %v1970 = vunpack.c.l.b16 %v1929
        %v1971 = vunpack.c.h.b16 %v1929
        %v1972 = vunpack.c.l.b16 %v1930
        %v1973 = vunpack.c.h.b16 %v1930
        %v1974 = vunpack.c.l.b16 %v1931
        %v1975 = vunpack.c.h.b16 %v1931
        %v1976 = vunpack.c.l.b16 %v1932
        %v1977 = vunpack.c.h.b16 %v1932
        %v1978 = vunpack.c.l.b16 %v1933
        %v1979 = vunpack.c.h.b16 %v1933
        %v1980 = vunpack.c.l.b16 %v1934
        %v1981 = vunpack.c.h.b16 %v1934
        %v1982 = vunpack.c.l.b16 %v1935
        %v1983 = vunpack.c.h.b16 %v1935
        %v1984 = vunpack.c.l.b16 %v1936
        %v1985 = vunpack.c.h.b16 %v1936
        %v1986 = vunpack.c.l.b16 %v1937
        %v1987 = vunpack.c.h.b16 %v1937
        %v1988 = vunpack.c.l.b16 %v1938
        %v1989 = vunpack.c.h.b16 %v1938
        %v1990 = vunpack.c.l.b16 %v1939
        %v1991 = vunpack.c.h.b16 %v1939
        %v1992 = vunpack.c.l.b16 %v1940
        %v1993 = vunpack.c.h.b16 %v1940
        %v1994 = vunpack.c.l.b16 %v1941
        %v1995 = vunpack.c.h.b16 %v1941
        %v1996 = vpack.c.b16 %v1966, %v1964
        %v1997 = vpack.c.b16 %v1967, %v1965
        %v1998 = vpack.c.b16 %v1970, %v1968
        %v1999 = vpack.c.b16 %v1971, %v1969
        %v2000 = vpack.c.b16 %v1974, %v1972
        %v2001 = vpack.c.b16 %v1975, %v1973
        %v2002 = vpack.c.b16 %v1978, %v1976
        %v2003 = vpack.c.b16 %v1979, %v1977
        %v2004 = vpack.c.b16 %v1982, %v1980
        %v2005 = vpack.c.b16 %v1983, %v1981
        %v2006 = vpack.c.b16 %v1986, %v1984
        %v2007 = vpack.c.b16 %v1987, %v1985
        %v2008 = vpack.c.b16 %v1990, %v1988
        %v2009 = vpack.c.b16 %v1991, %v1989
        %v2010 = vpack.c.b16 %v1994, %v1992
        %v2011 = vpack.c.b16 %v1995, %v1993
        %2028 = vmatpush.bf16.msra.mxu0 %v2010
        %2029 = vmatpush.bf16.msra.mxu0 %v2008
        %2030 = vmatpush.bf16.msra.mxu0 %v2006
        %2031 = vmatpush.bf16.msra.mxu0 %v2004
        %2032 = vmatpush.bf16.msra.mxu0 %v2002
        %2033 = vmatpush.bf16.msra.mxu0 %v2000
        %2034 = vmatpush.bf16.msra.mxu0 %v1998
        %2035 = vmatpush.bf16.msra.mxu0 %v1996
        %2036 = vmatmul.bf16.gmra.mxu0 %v1925
        %v2037 = vpop.f32.mrf.mxu0
        %v2038 = vadd.f32 %v1946, %v2037
        %v2039 = vpop.f32.mrf.mxu0
        %2040 = vdwg.mxu0
        %2041 = vmatpush.bf16.msra.mxu0 %v2011
        %2042 = vmatpush.bf16.msra.mxu0 %v2009
        %2043 = vmatpush.bf16.msra.mxu0 %v2007
        %2044 = vmatpush.bf16.msra.mxu0 %v2005
        %2045 = vmatpush.bf16.msra.mxu0 %v2003
        %2046 = vmatpush.bf16.msra.mxu0 %v2001
        %2047 = vmatpush.bf16.msra.mxu0 %v1999
        %2048 = vmatpush.bf16.msra.mxu0 %v1997
        %2049 = vmatmul.bf16.gmra.mxu0 %v1925
        %v2050 = vpop.f32.mrf.mxu0
        %v2051 = vadd.f32 %v1947, %v2050
        %v2052 = vpop.f32.mrf.mxu0
        %2053 = vdwg.mxu0
        %v2054 = vmul.f32 %v2051, %v2051
        %v2055 = vmul.f32 %v2051, %v2054
        %v2056 = vmul.f32 %v2055, 0.044715
        %v2057 = vadd.f32 %v2051, %v2056
        %v2058 = vmul.f32 %v2057, 0.7978846
        %v2059 = vtanh.pop %v2058
        %v2060 = vadd.f32 %v2059, 1.0
        %v2061 = vmul.f32 %v2060, 0.5
        %v2062 = vmul.f32 %v2051, %v2061
        %v2063 = vmul.f32 %v2038, %v2062
        %v2064 = vpack.c.bf16 %v2063, %v2063
        %v2065 = vld [vmem:[%s13] sm:$0xf]
        %v2066 = vld [vmem:[%s13 + $0x4] sm:$0xf]
        %v2067 = vld [vmem:[%s13 + $0x8] sm:$0xf]
        %v2068 = vld [vmem:[%s13 + $0xc] sm:$0xf]
        %v2069 = vld [vmem:[%s13 + $0x10] sm:$0xf]
        %v2070 = vld [vmem:[%s13 + $0x14] sm:$0xf]
        %v2071 = vld [vmem:[%s13 + $0x18] sm:$0xf]
        %v2072 = vld [vmem:[%s13 + $0x1c] sm:$0xf]
        %v2073 = vld [vmem:[%s13 + $0x20] sm:$0xf]
        %v2074 = vld [vmem:[%s13 + $0x24] sm:$0xf]
        %v2075 = vld [vmem:[%s13 + $0x28] sm:$0xf]
        %v2076 = vld [vmem:[%s13 + $0x2c] sm:$0xf]
        %v2077 = vld [vmem:[%s13 + $0x30] sm:$0xf]
        %v2078 = vld [vmem:[%s13 + $0x34] sm:$0xf]
        %v2079 = vld [vmem:[%s13 + $0x38] sm:$0xf]
        %v2080 = vld [vmem:[%s13 + $0x3c] sm:$0xf]
        %v2081 = vperm.slane %v487, 5
        %v2098 = vunpack.c.l.b16 %v2065
        %v2099 = vunpack.c.l.b16 %v2066
        %v2100 = vunpack.c.l.b16 %v2067
        %v2101 = vunpack.c.l.b16 %v2068
        %v2102 = vunpack.c.l.b16 %v2069
        %v2103 = vunpack.c.l.b16 %v2070
        %v2104 = vunpack.c.l.b16 %v2071
        %v2105 = vunpack.c.l.b16 %v2072
        %v2106 = vunpack.c.l.b16 %v2073
        %v2107 = vunpack.c.l.b16 %v2074
        %v2108 = vunpack.c.l.b16 %v2075
        %v2109 = vunpack.c.l.b16 %v2076
        %v2110 = vunpack.c.l.b16 %v2077
        %v2111 = vunpack.c.l.b16 %v2078
        %v2112 = vunpack.c.l.b16 %v2079
        %v2113 = vunpack.c.l.b16 %v2080
        %v2114 = vpack.c.b16 %v2099, %v2098
        %v2115 = vpack.c.b16 %v2101, %v2100
        %v2116 = vpack.c.b16 %v2103, %v2102
        %v2117 = vpack.c.b16 %v2105, %v2104
        %v2118 = vpack.c.b16 %v2107, %v2106
        %v2119 = vpack.c.b16 %v2109, %v2108
        %v2120 = vpack.c.b16 %v2111, %v2110
        %v2121 = vpack.c.b16 %v2113, %v2112
        %2130 = vmatpush.bf16.msra.mxu0 %v2121
        %2131 = vmatpush.bf16.msra.mxu0 %v2120
        %2132 = vmatpush.bf16.msra.mxu0 %v2119
        %2133 = vmatpush.bf16.msra.mxu0 %v2118
        %2134 = vmatpush.bf16.msra.mxu0 %v2117
        %2135 = vmatpush.bf16.msra.mxu0 %v2116
        %2136 = vmatpush.bf16.msra.mxu0 %v2115
        %2137 = vmatpush.bf16.msra.mxu0 %v2114
        %2138 = vmatmul.bf16.gmra.mxu0 %v2064
        %v2139 = vpop.f32.mrf.mxu0
        %v2140 = vadd.f32 %v2081, %v2139
        %v2141 = vpop.f32.mrf.mxu0
        %2142 = vdwg.mxu0
        %v2143 = vadd.f32 %v1900, %v2140
        %2144 = vst [vmem:[%s474] sm:$0xff] %v2143
        %s2145 = sand.u32 %s340, 1
        %s2146 = scalar_lea.sflag [#allocation4], %s2145
        %s2147 = sand.u32 %s340, 1
        %s2148 = smul.addr %s2147, 8
        %s2149 = scalar_lea.vmem [#allocation3], %s2148
        // Predicated region
        $region77: #{lbanp_encoder_layer.1} parent=75 // pred_check
          %p2150 = pneg %p350
        $region78: #{lbanp_encoder_layer.1} parent=75 // pred_check_branch
          %2152 = sbr.rel (%p2150) target = $region80
        $region79: #{lbanp_encoder_layer.1} parent=75 // pred_region
          %2154 = vsyncadd %s2146, 0
          %s2155 = smul.addr %s28, 8
          %s2156 = scalar_lea.hbm %s14, %s2155
          %s2158 = sshll.u32 %s2149, 4
          %s2159 = int_to_ptr.vmem [resolvable:$true] %s2158
          %s2160 = sshll.u32 %s2156, 4
          %s2161 = int_to_ptr.hbm [resolvable:$true] %s2160
          %2163 = dma.vmem_to_hbm [thread:$0]  %s2159, 128, %s2161, %s2146
        $region80: #{lbanp_encoder_layer.1} parent=75 // pred_fallthru
          _
      $region76: #{lbanp_encoder_layer.1} parent=5 // pred_fallthru
        _
      %p2164 = scmp.le.s32.totalorder 2, %s23
      // Predicated region
      $region81: #{lbanp_encoder_layer.1} parent=5 // pred_check
        %p2165 = pneg %p2164
      $region82: #{lbanp_encoder_layer.1} parent=5 // pred_check_branch
        %2167 = sbr.rel (%p2165) target = $region84
      $region83: #{lbanp_encoder_layer.1} parent=5 // pred_region
        %s2168 = ssub.s32 %s23, 2
        // Predicated region
        $region85: #{lbanp_encoder_layer.1} parent=83 // pred_check
          %p2169 = pneg %p356
        $region86: #{lbanp_encoder_layer.1} parent=83 // pred_check_branch
          %2171 = sbr.rel (%p2169) target = $region88
        $region87: #{lbanp_encoder_layer.1} parent=83 // pred_region
          %s2172 = sand.u32 %s341, 1
          %s2173 = scalar_lea.sflag [#allocation4], %s2172
          %s2174 = sand.u32 %s341, 1
          %s2175 = smul.addr %s2174, 8
          %s2176 = scalar_lea.vmem [#allocation3], %s2175
          %2178 = dma.done %s2173, 128
        $region88: #{lbanp_encoder_layer.1} parent=83 // pred_fallthru
          _
      $region84: #{lbanp_encoder_layer.1} parent=5 // pred_fallthru
        _
    $region6: #{lbanp_encoder_layer.1} parent=1 // loop_footer
      %s27 = sadd.s32 1, %s23
    $region7: #{lbanp_encoder_layer.1} parent=1 // loop_footer_branch
      %22 = sbr.rel target = $region3
    $region8: #{lbanp_encoder_layer.1} parent=1 // loop_exit
      _
    %2179 = vsyncpa [#allocation4], 1
    %s2180 = scalar_lea.sflag [#allocation4], 1
    %2181 = vsyncpa %s2180, 1

</llo_original>
